<compile_context>
chip_gen: v7x
topology: tpu7x:2x2x1
jax: 0.10.0
libtpu: 0.0.40
codegen_flags: <defaults>
</compile_context>

<pallas_src>
import numpy as np
from numpy import sin, cos, tan, pi, arcsin, arctan

import jax
import jax.numpy as jnp
from jax.experimental import pallas as pl
from jax.experimental.pallas import tpu as pltpu


# --------------------------------------------------------------------------
# Host-side spherical sampling-coordinate generation (ported from reference).
# --------------------------------------------------------------------------
def get_xy(delta_phi, delta_theta, kernel_size):
    kernel = np.zeros((kernel_size, kernel_size, 2), dtype=np.float64)
    for t_i in range(kernel_size):
        for t_j in range(kernel_size):
            i = int(kernel_size / 2) - t_i
            j = t_j - int(kernel_size / 2)
            if i != 0 and j != 0:
                kernel[t_i, t_j] = (
                    j / np.abs(j) * tan(np.abs(j) * delta_theta),
                    i / np.abs(i) * (tan(np.abs(i) * delta_phi) / cos(np.abs(j) * delta_theta)),
                )
            elif i == 0 and j != 0:
                kernel[t_i, t_j] = (j / np.abs(j) * tan(np.abs(j) * delta_theta), 0)
            elif i != 0 and j == 0:
                kernel[t_i, t_j] = (0, i / np.abs(i) * tan(np.abs(i) * delta_phi))
            elif kernel_size // 2 != 0:
                kernel[t_i, t_j] = (kernel_size // 2, kernel_size // 2)
            else:
                kernel[t_i, t_j] = (1, 1)
    return kernel


def cal_index(h, w, img_r, img_c, kernel_size):
    phi = -((img_r + 0.5) / h * pi - pi / 2)
    theta = (img_c + 0.5) / w * 2 * pi - pi
    delta_phi = pi / h
    delta_theta = 2 * pi / w
    xys = get_xy(delta_phi, delta_theta, kernel_size)
    x = xys[..., 0]
    y = xys[..., 1]
    with np.errstate(divide="ignore", invalid="ignore"):   # center tap is overwritten below
        rho = np.sqrt(x ** 2 + y ** 2)
        v = arctan(rho)
        new_phi = arcsin(cos(v) * sin(phi) + y * sin(v) * cos(phi) / rho)
        new_theta = theta + arctan(
            x * sin(v) / (rho * cos(phi) * cos(v) - y * sin(phi) * sin(v))
        )
    new_r = (-new_phi + pi / 2) * h / pi - 0.5
    new_c = (new_theta + pi) * w / 2 / pi - 0.5
    new_c = (new_c + w) % w
    new_result = np.stack([new_r, new_c], axis=-1)
    new_result[int(kernel_size / 2), int(kernel_size / 2)] = (img_r, img_c)
    return new_result


def gen_filters_coordinates(h, w, kernel_size=3, stride=1):
    co = np.array(
        [[cal_index(h, w, i, j, kernel_size) for j in range(0, w, stride)]
         for i in range(0, h, stride)]
    )
    return np.ascontiguousarray(co.transpose([4, 0, 1, 2, 3]))


def gen_grid_coordinates(h, w, kernel_size=3, stride=1):
    coordinates = gen_filters_coordinates(h, w, kernel_size, stride).copy()
    coordinates[0] = coordinates[0] * 2 / h - 1
    coordinates[1] = coordinates[1] * 2 / w - 1
    coordinates = coordinates[::-1]
    coordinates = coordinates.transpose(1, 3, 2, 4, 0)
    sz = coordinates.shape
    coordinates = coordinates.reshape(1, sz[0] * sz[1], sz[2] * sz[3], sz[4])
    # TODO(synk): reference code saves `coordinates.mat` via scipy.io.savemat; file I/O skipped.
    return coordinates.copy()


# --------------------------------------------------------------------------
# grid_sample(bilinear, padding=zeros, align_corners=False) index/weight tables.
# --------------------------------------------------------------------------
def _bilinear_tables(grid, H, W):
    g = grid[0].astype(np.float32)        # (3H, 3W, 2), last dim = (x, y)
    gx, gy = g[..., 0], g[..., 1]
    ix = ((gx + 1.0) * W - 1.0) / 2.0     # align_corners=False unnormalize
    iy = ((gy + 1.0) * H - 1.0) / 2.0
    x0 = np.floor(ix)
    y0 = np.floor(iy)
    x1 = x0 + 1.0
    y1 = y0 + 1.0
    wx1 = ix - x0
    wx0 = 1.0 - wx1
    wy1 = iy - y0
    wy0 = 1.0 - wy1

    def valid(xi, yi):
        return ((xi >= 0) & (xi <= W - 1) & (yi >= 0) & (yi <= H - 1)).astype(np.float32)

    w00 = (wy0 * wx0 * valid(x0, y0)).astype(np.float32)
    w01 = (wy0 * wx1 * valid(x1, y0)).astype(np.float32)
    w10 = (wy1 * wx0 * valid(x0, y1)).astype(np.float32)
    w11 = (wy1 * wx1 * valid(x1, y1)).astype(np.float32)

    x0c = np.clip(x0, 0, W - 1).astype(np.int32)
    x1c = np.clip(x1, 0, W - 1).astype(np.int32)
    y0c = np.clip(y0, 0, H - 1).astype(np.int32)
    y1c = np.clip(y1, 0, H - 1).astype(np.int32)
    return (y0c, x0c, y1c, x1c), (w00, w01, w10, w11)


def _round_up(v, m):
    return ((v + m - 1) // m) * m


def _to_taps(a, H, W):
    # (3H, 3W) -> (H*W, 9), tap index = kh*3 + kw (matches OIHW conv-weight layout).
    return a.reshape(H, 3, W, 3).transpose(0, 2, 1, 3).reshape(H * W, 9)


# --------------------------------------------------------------------------
# Pallas kernel: per (row-tile, batch) step -> blend (VPU) + conv matmul (MXU).
# --------------------------------------------------------------------------
def _sphere_conv_kernel(wt_ref, v00_ref, v01_ref, v10_ref, v11_ref,
                        wmat_ref, bias_ref, out_ref):
    # Bilinear corner blend: running accumulation in f32 on the VPU so only one
    # (tm, K) f32 temporary is live at a time.  f32 blend is portable (v5e has
    # no bf16 VALU); the casts hide in spare slots of a memory-bound kernel.
    acc = wt_ref[0].astype(jnp.float32) * v00_ref[0].astype(jnp.float32)
    acc = acc + wt_ref[1].astype(jnp.float32) * v01_ref[0].astype(jnp.float32)
    acc = acc + wt_ref[2].astype(jnp.float32) * v10_ref[0].astype(jnp.float32)
    acc = acc + wt_ref[3].astype(jnp.float32) * v11_ref[0].astype(jnp.float32)
    # Conv-as-matmul on the MXU: (tm, 9*C_in) x (9*C_in, C_out_p), f32 accumulate.
    patches = acc.astype(wmat_ref.dtype)
    res = jnp.dot(patches, wmat_ref[...], preferred_element_type=jnp.float32)
    out_ref[0] = (res + bias_ref[...]).astype(out_ref.dtype)


def _vmem_bytes_estimate(tm, K, C_out_p, val_bytes):
    streams = 4 * 2 * tm * K * val_bytes                       # v00..v11 double-buffered
    wtab = 2 * 4 * tm * K * val_bytes                          # expanded corner weights x2 bufs
    consts = 2 * (C_out_p * K * val_bytes + C_out_p * 4)       # wmat + bias (2 buffers each)
    outb = 2 * tm * C_out_p * 4                                # output block double-buffered
    temps = 3 * tm * K * 4 + tm * K * val_bytes + tm * C_out_p * 4   # in-kernel temporaries
    return streams + wtab + consts + outb + temps


def sphere_conv2d(x, weight, bias, kernel_size=3, stride=1, row_tile=512,
                  compute_dtype=jnp.bfloat16):
    """x: (N, C_in, H, W) f32 NCHW; weight: (C_out, C_in, 3, 3); bias: (C_out,).

    compute_dtype controls the storage dtype of the gathered corner values,
    bilinear weights and conv weights (bf16 by default; pass jnp.float32 for an
    exact-f32 fallback path).
    """
    assert kernel_size == 3 and stride == 1, "reference layer only supports 3x3 / stride 1"
    assert row_tile % 128 == 0
    N, C, H, W = x.shape
    C_out = weight.shape[0]
    K = C * 9                      # tap-major: k = (kh*3 + kw) * C_in + c
    HW = H * W
    val_bytes = int(np.dtype(compute_dtype).itemsize)

    # ---- host-side sampling tables -----------------------------------------------
    grid_np = gen_grid_coordinates(H, W, kernel_size, stride)        # (1, 3H, 3W, 2)
    (y0, x0, y1, x1), (w00, w01, w10, w11) = _bilinear_tables(grid_np, H, W)
    y0, x0, y1, x1 = (_to_taps(a, H, W) for a in (y0, x0, y1, x1))
    w00, w01, w10, w11 = (_to_taps(a, H, W) for a in (w00, w01, w10, w11))

    # ---- tiling: lane-dense (128-multiple) output channels, padded row count ------
    C_out_p = _round_up(C_out, 128)
    if HW >= row_tile:
        tm = row_tile
        HWp = _round_up(HW, tm)
    else:
        HWp = _round_up(HW, 128)
        tm = HWp

    # VMEM cap: 75% of per-core capacity (v7x has only 64 MiB; v5e/v6e have 128 MiB).
    try:
        vmem_cap = int(pltpu.get_tpu_info().vmem_capacity_bytes)
    except Exception:
        vmem_cap = 64 * 1024 * 1024          # conservative fallback (v7x per-core)
    vmem_budget = (3 * vmem_cap) // 4
    while (_vmem_bytes_estimate(tm, K, C_out_p, val_bytes) > vmem_budget
           and tm >= 256 and tm % 256 == 0 and HWp % (tm // 2) == 0):
        tm //= 2
    # TODO(synk): for very large C_in (a (tm, 9*C_in) tile not fitting even at tm=128)
    # add a K-reduction grid axis (last, "arbitrary") with an f32 accumulator scratch.

    # ---- corner-value gather (XLA side): NHWC + tap-major => NO large transpose ---
    # Values stored in compute_dtype (bf16 default) to halve the dominant HBM streams.
    x_nhwc = jnp.transpose(jnp.asarray(x).astype(compute_dtype), (0, 2, 3, 1))   # (N,H,W,C)

    def gather(yi, xi):
        v = x_nhwc[:, yi, xi, :]                 # (N, HW, 9, C) -- already tap-major
        v = v.reshape(N, HW, K)
        return jnp.pad(v, ((0, 0), (0, HWp - HW), (0, 0)))

    v00 = gather(y0, x0)
    v01 = gather(y0, x1)
    v10 = gather(y1, x0)
    v11 = gather(y1, x1)
    # TODO(synk): fully fuse the gather into the kernel (x kept in HBM via
    # memory_space=pl.ANY + scalar-prefetched index tables + manual DMA of the needed
    # input rows) to remove the 4x (N, HWp, 9*C) HBM round trip entirely.

    # ---- bilinear corner weights, pre-expanded across channels (tap-major) --------
    # (4, HWp, 9*C); the index_map depends only on the row-tile index and batch is the
    # innermost grid axis, so each tile is DMA'd once and reused across the batch.
    wtab_np = np.stack([np.repeat(w, C, axis=1) for w in (w00, w01, w10, w11)], axis=0)
    wtab_np = np.pad(wtab_np.astype(np.float32), ((0, 0), (0, HWp - HW), (0, 0)))
    wtab = jnp.asarray(wtab_np).astype(compute_dtype)

    # ---- conv weight / bias, tap-major rows, output channels padded to 128 --------
    wmat = jnp.transpose(jnp.asarray(weight, jnp.float32), (2, 3, 1, 0)).reshape(K, C_out)
    wmat = jnp.pad(wmat, ((0, 0), (0, C_out_p - C_out))).astype(compute_dtype)
    bias2d = jnp.pad(jnp.asarray(bias, jnp.float32).reshape(1, C_out),
                     ((0, 0), (0, C_out_p - C_out)))

    est = _vmem_bytes_estimate(tm, K, C_out_p, val_bytes)
    vmem_limit = int(min(max(2 * est, 16 * 1024 * 1024), vmem_budget))

    # grid = (row tiles, batch): batch innermost so the expanded corner-weight tile
    # (whose index_map depends only on i) is fetched once per row tile.
    val_block = lambda i, n: (n, i, 0)
    out_full = pl.pallas_call(
        _sphere_conv_kernel,
        out_shape=jax.ShapeDtypeStruct((N, HWp, C_out_p), jnp.float32),
        grid=(HWp // tm, N),
        in_specs=[
            pl.BlockSpec((4, tm, K), lambda i, n: (0, i, 0)),        # expanded corner weights
            pl.BlockSpec((1, tm, K), val_block),                     # v00
            pl.BlockSpec((1, tm, K), val_block),                     # v01
            pl.BlockSpec((1, tm, K), val_block),                     # v10
            pl.BlockSpec((1, tm, K), val_block),                     # v11
            pl.BlockSpec((K, C_out_p), lambda i, n: (0, 0)),         # conv weight matrix
            pl.BlockSpec((1, C_out_p), lambda i, n: (0, 0)),         # bias
        ],
        out_specs=pl.BlockSpec((1, tm, C_out_p), val_block),
        compiler_params=pltpu.CompilerParams(
            dimension_semantics=("parallel", "parallel"),
            vmem_limit_bytes=vmem_limit),
    )(wtab, v00, v01, v10, v11, wmat, bias2d)
    # TODO(synk): single-buffer the grid-invariant operands (wmat/bias) via
    # pipeline_mode=pl.Buffered(1) and emit the output channel-major (transposed
    # matmul -> (C_out_p, tm) block) to drop the final NHWC->NCHW relayout, once
    # those lowerings are verified on all target generations.

    out = out_full[:, :HW, :C_out].reshape(N, H, W, C_out)
    return jnp.transpose(out, (0, 3, 1, 2))                          # back to NCHW


# --------------------------------------------------------------------------
# Pure-XLA reference (grid_sample + stride-3 conv) for correctness checks.
# quantize_bf16=True mirrors the kernel's bf16 storage (f32 accumulation).
# --------------------------------------------------------------------------
def _reference(x, weight, bias, kernel_size=3, stride=1, quantize_bf16=True):
    N, C, H, W = x.shape
    grid = gen_grid_coordinates(H, W, kernel_size, stride)
    (y0, x0, y1, x1), (w00, w01, w10, w11) = _bilinear_tables(grid, H, W)

    if quantize_bf16:
        xq = x.astype(jnp.bfloat16).astype(jnp.float32)
        qt = lambda t: jnp.asarray(t).astype(jnp.bfloat16).astype(jnp.float32)
        w00, w01, w10, w11 = (qt(t) for t in (w00, w01, w10, w11))
        wq = jnp.asarray(weight, jnp.float32).astype(jnp.bfloat16)
    else:
        xq = x
        wq = jnp.asarray(weight, jnp.float32)

    def g(yi, xi):
        return xq[:, :, yi, xi]                                      # (N, C, 3H, 3W)

    sampled = (w00 * g(y0, x0) + w01 * g(y0, x1)
               + w10 * g(y1, x0) + w11 * g(y1, x1))
    if quantize_bf16:
        sampled = sampled.astype(jnp.bfloat16)
    out = jax.lax.conv_general_dilated(
        sampled, wq, (kernel_size, kernel_size), 'VALID',
        dimension_numbers=('NCHW', 'OIHW', 'NCHW'),
        preferred_element_type=jnp.float32)
    return out + bias.reshape(1, -1, 1, 1)


if __name__ == "__main__":
    N, C_in, H, W, C_out = 2, 4, 16, 16, 8
    key = jax.random.PRNGKey(0)
    kx, kw = jax.random.split(key)

    x = jax.random.normal(kx, (N, C_in, H, W), dtype=jnp.float32)

    # Deterministic parameter init matching the module's reset_parameters:
    # kaiming_uniform_(a=sqrt(5)) -> uniform(-1/sqrt(fan_in), 1/sqrt(fan_in)); bias zero.
    fan_in = C_in * 3 * 3
    bound = 1.0 / np.sqrt(fan_in)
    weight = jax.random.uniform(kw, (C_out, C_in, 3, 3),
                                minval=-bound, maxval=bound, dtype=jnp.float32)
    bias = jnp.zeros((C_out,), jnp.float32)

    out = jax.block_until_ready(sphere_conv2d(x, weight, bias))

    # Tight check against a reference with matching bf16 storage of sampled values.
    ref_q = jax.block_until_ready(_reference(x, weight, bias, quantize_bf16=True))
    np.testing.assert_allclose(np.asarray(out), np.asarray(ref_q), rtol=5e-3, atol=5e-3)

    # Loose sanity check against the pure-f32 module semantics (bf16 error budget).
    ref_f32 = jax.block_until_ready(_reference(x, weight, bias, quantize_bf16=False))
    np.testing.assert_allclose(np.asarray(out), np.asarray(ref_f32), rtol=0.1, atol=0.1)

    print("KERNEL_OK")
</pallas_src>

<mosaic_0001>
module attributes {stable_mosaic.version = 11 : i64} {
  func.func @_sphere_conv_kernel(%arg0: i32, %arg1: i32, %arg2: memref<4x256x36xbf16, #tpu.memory_space<vmem>>, %arg3: memref<1x256x36xbf16, #tpu.memory_space<vmem>>, %arg4: memref<1x256x36xbf16, #tpu.memory_space<vmem>>, %arg5: memref<1x256x36xbf16, #tpu.memory_space<vmem>>, %arg6: memref<1x256x36xbf16, #tpu.memory_space<vmem>>, %arg7: memref<36x128xbf16, #tpu.memory_space<vmem>>, %arg8: memref<1x128xf32, #tpu.memory_space<vmem>>, %arg9: memref<1x256x128xf32, #tpu.memory_space<vmem>>) attributes {dimension_semantics = [#tpu.dimension_semantics<parallel>, #tpu.dimension_semantics<parallel>], iteration_bounds = array<i64: 1, 2>, scalar_prefetch = 0 : i64, scratch_operands = 0 : i64, tpu.core_type = #tpu.core_type<tc>, window_params = [{transform_indices = @transform_0, window_bounds = array<i64: 4, 256, 36>}, {transform_indices = @transform_1, window_bounds = array<i64: 1, 256, 36>}, {transform_indices = @transform_2, window_bounds = array<i64: 1, 256, 36>}, {transform_indices = @transform_3, window_bounds = array<i64: 1, 256, 36>}, {transform_indices = @transform_4, window_bounds = array<i64: 1, 256, 36>}, {pipeline_mode = #tpu.pipeline_mode<synchronous>, transform_indices = @transform_5, window_bounds = array<i64: 36, 128>}, {pipeline_mode = #tpu.pipeline_mode<synchronous>, transform_indices = @transform_6, window_bounds = array<i64: 1, 128>}, {transform_indices = @transform_7, window_bounds = array<i64: 1, 256, 128>}]} {
    %c0 = arith.constant 0 : index
    %c0_0 = arith.constant 0 : index
    %c0_1 = arith.constant 0 : index
    %0 = vector.load %arg2[%c0, %c0_0, %c0_1] : memref<4x256x36xbf16, #tpu.memory_space<vmem>>, vector<1x256x36xbf16>
    %1 = vector.shape_cast %0 : vector<1x256x36xbf16> to vector<256x36xbf16>
    %2 = arith.extf %1 : vector<256x36xbf16> to vector<256x36xf32>
    %c0_2 = arith.constant 0 : index
    %c0_3 = arith.constant 0 : index
    %c0_4 = arith.constant 0 : index
    %3 = vector.load %arg3[%c0_2, %c0_3, %c0_4] : memref<1x256x36xbf16, #tpu.memory_space<vmem>>, vector<1x256x36xbf16>
    %4 = vector.shape_cast %3 : vector<1x256x36xbf16> to vector<256x36xbf16>
    %5 = arith.extf %4 : vector<256x36xbf16> to vector<256x36xf32>
    %6 = arith.mulf %2, %5 : vector<256x36xf32>
    %c1 = arith.constant 1 : index
    %c0_5 = arith.constant 0 : index
    %c0_6 = arith.constant 0 : index
    %7 = vector.load %arg2[%c1, %c0_5, %c0_6] : memref<4x256x36xbf16, #tpu.memory_space<vmem>>, vector<1x256x36xbf16>
    %8 = vector.shape_cast %7 : vector<1x256x36xbf16> to vector<256x36xbf16>
    %9 = arith.extf %8 : vector<256x36xbf16> to vector<256x36xf32>
    %c0_7 = arith.constant 0 : index
    %c0_8 = arith.constant 0 : index
    %c0_9 = arith.constant 0 : index
    %10 = vector.load %arg4[%c0_7, %c0_8, %c0_9] : memref<1x256x36xbf16, #tpu.memory_space<vmem>>, vector<1x256x36xbf16>
    %11 = vector.shape_cast %10 : vector<1x256x36xbf16> to vector<256x36xbf16>
    %12 = arith.extf %11 : vector<256x36xbf16> to vector<256x36xf32>
    %13 = arith.mulf %9, %12 : vector<256x36xf32>
    %14 = arith.addf %6, %13 : vector<256x36xf32>
    %c2 = arith.constant 2 : index
    %c0_10 = arith.constant 0 : index
    %c0_11 = arith.constant 0 : index
    %15 = vector.load %arg2[%c2, %c0_10, %c0_11] : memref<4x256x36xbf16, #tpu.memory_space<vmem>>, vector<1x256x36xbf16>
    %16 = vector.shape_cast %15 : vector<1x256x36xbf16> to vector<256x36xbf16>
    %17 = arith.extf %16 : vector<256x36xbf16> to vector<256x36xf32>
    %c0_12 = arith.constant 0 : index
    %c0_13 = arith.constant 0 : index
    %c0_14 = arith.constant 0 : index
    %18 = vector.load %arg5[%c0_12, %c0_13, %c0_14] : memref<1x256x36xbf16, #tpu.memory_space<vmem>>, vector<1x256x36xbf16>
    %19 = vector.shape_cast %18 : vector<1x256x36xbf16> to vector<256x36xbf16>
    %20 = arith.extf %19 : vector<256x36xbf16> to vector<256x36xf32>
    %21 = arith.mulf %17, %20 : vector<256x36xf32>
    %22 = arith.addf %14, %21 : vector<256x36xf32>
    %c3 = arith.constant 3 : index
    %c0_15 = arith.constant 0 : index
    %c0_16 = arith.constant 0 : index
    %23 = vector.load %arg2[%c3, %c0_15, %c0_16] : memref<4x256x36xbf16, #tpu.memory_space<vmem>>, vector<1x256x36xbf16>
    %24 = vector.shape_cast %23 : vector<1x256x36xbf16> to vector<256x36xbf16>
    %25 = arith.extf %24 : vector<256x36xbf16> to vector<256x36xf32>
    %c0_17 = arith.constant 0 : index
    %c0_18 = arith.constant 0 : index
    %c0_19 = arith.constant 0 : index
    %26 = vector.load %arg6[%c0_17, %c0_18, %c0_19] : memref<1x256x36xbf16, #tpu.memory_space<vmem>>, vector<1x256x36xbf16>
    %27 = vector.shape_cast %26 : vector<1x256x36xbf16> to vector<256x36xbf16>
    %28 = arith.extf %27 : vector<256x36xbf16> to vector<256x36xf32>
    %29 = arith.mulf %25, %28 : vector<256x36xf32>
    %30 = arith.addf %22, %29 : vector<256x36xf32>
    %31 = arith.truncf %30 : vector<256x36xf32> to vector<256x36xbf16>
    %c0_20 = arith.constant 0 : index
    %c0_21 = arith.constant 0 : index
    %32 = vector.load %arg7[%c0_20, %c0_21] : memref<36x128xbf16, #tpu.memory_space<vmem>>, vector<36x128xbf16>
    %cst = arith.constant dense<0.000000e+00> : vector<256x128xf32>
    %33 = tpu.matmul %31, %32, %cst {dimension_numbers = #tpu.dot_dimension_numbers<[1], [0], [0], [1], [0, 0, 1, 1], [], []>} : vector<256x36xbf16>, vector<36x128xbf16>, vector<256x128xf32> -> vector<256x128xf32>
    %c0_22 = arith.constant 0 : index
    %c0_23 = arith.constant 0 : index
    %34 = vector.load %arg8[%c0_22, %c0_23] : memref<1x128xf32, #tpu.memory_space<vmem>>, vector<1x128xf32>
    %35 = vector.broadcast %34 : vector<1x128xf32> to vector<256x128xf32>
    %36 = arith.addf %33, %35 : vector<256x128xf32>
    %c0_24 = arith.constant 0 : index
    %c0_25 = arith.constant 0 : index
    %c0_26 = arith.constant 0 : index
    %37 = vector.load %arg9[%c0_24, %c0_25, %c0_26] : memref<1x256x128xf32, #tpu.memory_space<vmem>>, vector<1x256x128xf32>
    %38 = vector.shape_cast %37 : vector<1x256x128xf32> to vector<256x128xf32>
    %39 = vector.shape_cast %36 : vector<256x128xf32> to vector<1x256x128xf32>
    tpu.vector_store %arg9[%c0_24, %c0_25, %c0_26], %39 {strides = array<i32>} : memref<1x256x128xf32, #tpu.memory_space<vmem>>, vector<1x256x128xf32>,
    return
  }
  func.func @transform_0(%arg0: i32, %arg1: i32) -> (i32, i32, i32) {
    %c0_i32 = arith.constant 0 : i32
    %c0_i32_0 = arith.constant 0 : i32
    %c0_i32_1 = arith.constant 0 : i32
    return %c0_i32, %arg0, %c0_i32_0 : i32, i32, i32
  }
  func.func @transform_1(%arg0: i32, %arg1: i32) -> (i32, i32, i32) {
    %c0_i32 = arith.constant 0 : i32
    %c0_i32_0 = arith.constant 0 : i32
    return %arg1, %arg0, %c0_i32 : i32, i32, i32
  }
  func.func @transform_2(%arg0: i32, %arg1: i32) -> (i32, i32, i32) {
    %c0_i32 = arith.constant 0 : i32
    %c0_i32_0 = arith.constant 0 : i32
    return %arg1, %arg0, %c0_i32 : i32, i32, i32
  }
  func.func @transform_3(%arg0: i32, %arg1: i32) -> (i32, i32, i32) {
    %c0_i32 = arith.constant 0 : i32
    %c0_i32_0 = arith.constant 0 : i32
    return %arg1, %arg0, %c0_i32 : i32, i32, i32
  }
  func.func @transform_4(%arg0: i32, %arg1: i32) -> (i32, i32, i32) {
    %c0_i32 = arith.constant 0 : i32
    %c0_i32_0 = arith.constant 0 : i32
    return %arg1, %arg0, %c0_i32 : i32, i32, i32
  }
  func.func @transform_5(%arg0: i32, %arg1: i32) -> (i32, i32) {
    %c0_i32 = arith.constant 0 : i32
    %c0_i32_0 = arith.constant 0 : i32
    %c0_i32_1 = arith.constant 0 : i32
    return %c0_i32, %c0_i32_0 : i32, i32
  }
  func.func @transform_6(%arg0: i32, %arg1: i32) -> (i32, i32) {
    %c0_i32 = arith.constant 0 : i32
    %c0_i32_0 = arith.constant 0 : i32
    %c0_i32_1 = arith.constant 0 : i32
    return %c0_i32, %c0_i32_0 : i32, i32
  }
  func.func @transform_7(%arg0: i32, %arg1: i32) -> (i32, i32, i32) {
    %c0_i32 = arith.constant 0 : i32
    %c0_i32_0 = arith.constant 0 : i32
    return %arg1, %arg0, %c0_i32 : i32, i32, i32
  }
}

</mosaic_0001>

<llo_original>
// kernel: tpu_custom_call.1
$region0: #{tpu_custom_call.1}
  #allocation0 [shape = 'u32[]', space=smem, size = 0x4, offset = 0x4, fixed_abs, tag = 'smem constant byte address 0x4 - core index']
  #allocation1 [shape = 'u32[144,128]{1,0:T(1,128)}', space=vmem, size = 0x12000, scoped, tag = 'internal scratch']
  %s0 = inlined_call_operand.vmem [shape: bf16[4,256,36], index: 0, kind: input, shape index: {}]
  %s1 = inlined_call_operand.vmem [shape: bf16[2,256,36], index: 1, kind: input, shape index: {}]
  %s2 = inlined_call_operand.vmem [shape: bf16[2,256,36], index: 2, kind: input, shape index: {}]
  %s3 = inlined_call_operand.vmem [shape: bf16[2,256,36], index: 3, kind: input, shape index: {}]
  %s4 = inlined_call_operand.vmem [shape: bf16[2,256,36], index: 4, kind: input, shape index: {}]
  %s5 = inlined_call_operand.vmem [shape: bf16[36,128], index: 5, kind: input, shape index: {}]
  %s6 = inlined_call_operand.vmem [shape: f32[1,128], index: 6, kind: input, shape index: {}]
  %s7 = inlined_call_operand.hbm [shape: f32[2,256,128], index: 7, kind: output, shape index: {}]
  %s8 = sld [smem:[#allocation0]]
  $region61: #{tpu_custom_call.1} parent=0
    _
  %s10 = ssub.s32 1, %s8
  %s11 = scalar_select 0, %s10, %s8
  $region1: #{tpu_custom_call.1} parent=0
    #allocation2 [shape = 'u8[262144]{0}', space=vmem, size = 0x40000, scoped, tag = 'output window, operand 0']
    #allocation3 [shape = 's32[2]{0}', space=sflag, size = 0x8, scoped, tag = 'scoped memory for tpu_custom_call.1']
    %12 = vsyncpa [#allocation3], 0
    %s13 = scalar_lea.sflag [#allocation3], 1
    %14 = vsyncpa %s13, 0
    loop: start=0, step=1, limit=4
    $region2: #{tpu_custom_call.1} parent=1 // loop_pre_header
      _
    $region3: #{tpu_custom_call.1} parent=1 // loop_header
      %s16 = sphi 0, %s20
      %p17 = scmp.ge.s32.totalorder %s16, 4
      %s23 = sphi 0, %s35
      %s24 = sphi 0, %s31
      %s25 = sphi 0, %s23
      %s26 = sphi 0, %s24
      %s27 = sphi 0, %s25
      %s28 = sphi 0, %s26
      %s38 = sphi 0, %s40
      %s41 = sphi 0, %s38
      %s42 = sphi 0, %s41
      %s58 = sphi 0, %s42
      %s66 = sphi 0, %s68
      %s69 = sphi 0, %s66
      %s70 = sphi 0, %s69
      %s86 = sphi 0, %s70
      %s94 = sphi 0, %s96
      %s97 = sphi 0, %s94
      %s98 = sphi 0, %s97
      %s114 = sphi 0, %s98
      %s122 = sphi 0, %s124
      %s125 = sphi 0, %s122
      %s126 = sphi 0, %s125
      %s142 = sphi 0, %s126
      %s150 = sphi 0, %s152
      %s153 = sphi 0, %s150
      %s154 = sphi 0, %s153
      %s170 = sphi 0, %s154
      %s174 = sphi 0, %s174
      %s176 = sphi 0, %s174
      %s177 = sphi 0, %s176
      %s191 = sphi 0, %s177
      %s195 = sphi 0, %s195
      %s197 = sphi 0, %s195
      %s198 = sphi 0, %s197
      %s212 = sphi 0, %s198
      %s220 = sphi 0, %s222
      %s223 = sphi 0, %s220
      %s224 = sphi 0, %s223
      %s240 = sphi 0, %s224
    $region4: #{tpu_custom_call.1} parent=1 // loop_header_branch
      %19 = sbr.rel (%p17) target = $region8
    $region5: #{tpu_custom_call.1} parent=1 // loop_body
      %s21 = ssub.s32 %s16, 1
      %s22 = ssub.s32 %s16, 2
      %s29 = sadd.s32 1, %s24
      %p30 = scmp.ge.s32.totalorder %s29, 2
      %s31 = scalar_select %p30, 0, %s29
      %s32 = sadd.s32 1, %s23
      %s33 = scalar_select %p30, %s32, %s23
      %p34 = scmp.ge.s32.totalorder %s33, 1
      %s35 = scalar_select %p34, 0, %s33
      %s36 = ssub.s32 %s23, %s35
      %p37 = scmp.eq.s32.totalorder %s36, 0
      %s39 = sadd.s32 %s38, 1
      %s40 = scalar_select %p37, %s38, %s39
      %p43 = pneg %p37
      %p44 = scmp.eq.s32.totalorder %s16, 1
      %p45 = por %p43, %p44
      %p46 = scmp.ne.s32.totalorder %s38, %s41
      %p47 = scmp.eq.s32.totalorder %s16, 0
      %p48 = por %p46, %p47
      %p49 = scmp.ne.s32.totalorder %s38, %s41
      %p50 = scmp.eq.s32.totalorder %s21, 1
      %p51 = por %p49, %p50
      %p52 = scmp.ne.s32.totalorder %s41, %s42
      %p53 = scmp.eq.s32.totalorder %s21, 0
      %p54 = por %p52, %p53
      %p55 = scmp.ne.s32.totalorder %s41, %s42
      %p56 = scmp.eq.s32.totalorder %s22, 1
      %p57 = por %p55, %p56
      %p59 = scmp.ne.s32.totalorder %s42, %s58
      %p60 = scmp.eq.s32.totalorder %s22, 0
      %p61 = por %p59, %p60
      %s62 = ssub.s32 %s24, %s31
      %s63 = ssub.s32 %s23, %s35
      %s64 = sor.u32 %s62, %s63
      %p65 = scmp.eq.s32.totalorder %s64, 0
      %s67 = sadd.s32 %s66, 1
      %s68 = scalar_select %p65, %s66, %s67
      %p71 = pneg %p65
      %p72 = scmp.eq.s32.totalorder %s16, 1
      %p73 = por %p71, %p72
      %p74 = scmp.ne.s32.totalorder %s66, %s69
      %p75 = scmp.eq.s32.totalorder %s16, 0
      %p76 = por %p74, %p75
      %p77 = scmp.ne.s32.totalorder %s66, %s69
      %p78 = scmp.eq.s32.totalorder %s21, 1
      %p79 = por %p77, %p78
      %p80 = scmp.ne.s32.totalorder %s69, %s70
      %p81 = scmp.eq.s32.totalorder %s21, 0
      %p82 = por %p80, %p81
      %p83 = scmp.ne.s32.totalorder %s69, %s70
      %p84 = scmp.eq.s32.totalorder %s22, 1
      %p85 = por %p83, %p84
      %p87 = scmp.ne.s32.totalorder %s70, %s86
      %p88 = scmp.eq.s32.totalorder %s22, 0
      %p89 = por %p87, %p88
      %s90 = ssub.s32 %s24, %s31
      %s91 = ssub.s32 %s23, %s35
      %s92 = sor.u32 %s90, %s91
      %p93 = scmp.eq.s32.totalorder %s92, 0
      %s95 = sadd.s32 %s94, 1
      %s96 = scalar_select %p93, %s94, %s95
      %p99 = pneg %p93
      %p100 = scmp.eq.s32.totalorder %s16, 1
      %p101 = por %p99, %p100
      %p102 = scmp.ne.s32.totalorder %s94, %s97
      %p103 = scmp.eq.s32.totalorder %s16, 0
      %p104 = por %p102, %p103
      %p105 = scmp.ne.s32.totalorder %s94, %s97
      %p106 = scmp.eq.s32.totalorder %s21, 1
      %p107 = por %p105, %p106
      %p108 = scmp.ne.s32.totalorder %s97, %s98
      %p109 = scmp.eq.s32.totalorder %s21, 0
      %p110 = por %p108, %p109
      %p111 = scmp.ne.s32.totalorder %s97, %s98
      %p112 = scmp.eq.s32.totalorder %s22, 1
      %p113 = por %p111, %p112
      %p115 = scmp.ne.s32.totalorder %s98, %s114
      %p116 = scmp.eq.s32.totalorder %s22, 0
      %p117 = por %p115, %p116
      %s118 = ssub.s32 %s24, %s31
      %s119 = ssub.s32 %s23, %s35
      %s120 = sor.u32 %s118, %s119
      %p121 = scmp.eq.s32.totalorder %s120, 0
      %s123 = sadd.s32 %s122, 1
      %s124 = scalar_select %p121, %s122, %s123
      %p127 = pneg %p121
      %p128 = scmp.eq.s32.totalorder %s16, 1
      %p129 = por %p127, %p128
      %p130 = scmp.ne.s32.totalorder %s122, %s125
      %p131 = scmp.eq.s32.totalorder %s16, 0
      %p132 = por %p130, %p131
      %p133 = scmp.ne.s32.totalorder %s122, %s125
      %p134 = scmp.eq.s32.totalorder %s21, 1
      %p135 = por %p133, %p134
      %p136 = scmp.ne.s32.totalorder %s125, %s126
      %p137 = scmp.eq.s32.totalorder %s21, 0
      %p138 = por %p136, %p137
      %p139 = scmp.ne.s32.totalorder %s125, %s126
      %p140 = scmp.eq.s32.totalorder %s22, 1
      %p141 = por %p139, %p140
      %p143 = scmp.ne.s32.totalorder %s126, %s142
      %p144 = scmp.eq.s32.totalorder %s22, 0
      %p145 = por %p143, %p144
      %s146 = ssub.s32 %s24, %s31
      %s147 = ssub.s32 %s23, %s35
      %s148 = sor.u32 %s146, %s147
      %p149 = scmp.eq.s32.totalorder %s148, 0
      %s151 = sadd.s32 %s150, 1
      %s152 = scalar_select %p149, %s150, %s151
      %p155 = pneg %p149
      %p156 = scmp.eq.s32.totalorder %s16, 1
      %p157 = por %p155, %p156
      %p158 = scmp.ne.s32.totalorder %s150, %s153
      %p159 = scmp.eq.s32.totalorder %s16, 0
      %p160 = por %p158, %p159
      %p161 = scmp.ne.s32.totalorder %s150, %s153
      %p162 = scmp.eq.s32.totalorder %s21, 1
      %p163 = por %p161, %p162
      %p164 = scmp.ne.s32.totalorder %s153, %s154
      %p165 = scmp.eq.s32.totalorder %s21, 0
      %p166 = por %p164, %p165
      %p167 = scmp.ne.s32.totalorder %s153, %s154
      %p168 = scmp.eq.s32.totalorder %s22, 1
      %p169 = por %p167, %p168
      %p171 = scmp.ne.s32.totalorder %s154, %s170
      %p172 = scmp.eq.s32.totalorder %s22, 0
      %p173 = por %p171, %p172
      %s175 = sadd.s32 %s174, 1
      %p178 = scmp.eq.s32.totalorder %s16, 1
      %p179 = scmp.ne.s32.totalorder %s174, %s176
      %p180 = scmp.eq.s32.totalorder %s16, 0
      %p181 = por %p179, %p180
      %p182 = scmp.ne.s32.totalorder %s174, %s176
      %p183 = scmp.eq.s32.totalorder %s21, 1
      %p184 = por %p182, %p183
      %p185 = scmp.ne.s32.totalorder %s176, %s177
      %p186 = scmp.eq.s32.totalorder %s21, 0
      %p187 = por %p185, %p186
      %p188 = scmp.ne.s32.totalorder %s176, %s177
      %p189 = scmp.eq.s32.totalorder %s22, 1
      %p190 = por %p188, %p189
      %p192 = scmp.ne.s32.totalorder %s177, %s191
      %p193 = scmp.eq.s32.totalorder %s22, 0
      %p194 = por %p192, %p193
      %s196 = sadd.s32 %s195, 1
      %p199 = scmp.eq.s32.totalorder %s16, 1
      %p200 = scmp.ne.s32.totalorder %s195, %s197
      %p201 = scmp.eq.s32.totalorder %s16, 0
      %p202 = por %p200, %p201
      %p203 = scmp.ne.s32.totalorder %s195, %s197
      %p204 = scmp.eq.s32.totalorder %s21, 1
      %p205 = por %p203, %p204
      %p206 = scmp.ne.s32.totalorder %s197, %s198
      %p207 = scmp.eq.s32.totalorder %s21, 0
      %p208 = por %p206, %p207
      %p209 = scmp.ne.s32.totalorder %s197, %s198
      %p210 = scmp.eq.s32.totalorder %s22, 1
      %p211 = por %p209, %p210
      %p213 = scmp.ne.s32.totalorder %s198, %s212
      %p214 = scmp.eq.s32.totalorder %s22, 0
      %p215 = por %p213, %p214
      %s216 = ssub.s32 %s24, %s31
      %s217 = ssub.s32 %s23, %s35
      %s218 = sor.u32 %s216, %s217
      %p219 = scmp.eq.s32.totalorder %s218, 0
      %s221 = sadd.s32 %s220, 1
      %s222 = scalar_select %p219, %s220, %s221
      %p225 = pneg %p219
      %p226 = scmp.eq.s32.totalorder %s16, 1
      %p227 = por %p225, %p226
      %p228 = scmp.ne.s32.totalorder %s220, %s223
      %p229 = scmp.eq.s32.totalorder %s16, 0
      %p230 = por %p228, %p229
      %p231 = scmp.ne.s32.totalorder %s220, %s223
      %p232 = scmp.eq.s32.totalorder %s21, 1
      %p233 = por %p231, %p232
      %p234 = scmp.ne.s32.totalorder %s223, %s224
      %p235 = scmp.eq.s32.totalorder %s21, 0
      %p236 = por %p234, %p235
      %p237 = scmp.ne.s32.totalorder %s223, %s224
      %p238 = scmp.eq.s32.totalorder %s22, 1
      %p239 = por %p237, %p238
      %p241 = scmp.ne.s32.totalorder %s224, %s240
      %p242 = scmp.eq.s32.totalorder %s22, 0
      %p243 = por %p241, %p242
      %p244 = scmp.le.s32.totalorder 1, %s16
      %p245 = scmp.lt.s32.totalorder %s16, 3
      %p246 = pnand %p244, %p245
      %p247 = pneg %p246
      // Predicated region
      $region9: #{tpu_custom_call.1} parent=5 // pred_check
        _
      $region10: #{tpu_custom_call.1} parent=5 // pred_check_branch
        %249 = sbr.rel (%p246) target = $region12
      $region11: #{tpu_custom_call.1} parent=5 // pred_region
        %s250 = ssub.s32 %s16, 1
        // Predicated region
        $region13: #{tpu_custom_call.1} parent=11 // pred_check
          %p251 = pneg %p54
        $region14: #{tpu_custom_call.1} parent=11 // pred_check_branch
          %253 = sbr.rel (%p251) target = $region16
        $region15: #{tpu_custom_call.1} parent=11 // pred_region
          %s254 = smul.u32 32, %s25
          %p255 = scmp.lt.s32.totalorder %s254, 31
          %s256 = scalar_select %p255, %s254, 31
          %s257 = smul.addr %s256, 4
          %s258 = scalar_lea.vmem %s0, %s257
          %s259 = smul.u32 32, %s25
        $region16: #{tpu_custom_call.1} parent=11 // pred_fallthru
          _
        // Predicated region
        $region17: #{tpu_custom_call.1} parent=11 // pred_check
          %p260 = pneg %p187
        $region18: #{tpu_custom_call.1} parent=11 // pred_check_branch
          %262 = sbr.rel (%p260) target = $region20
        $region19: #{tpu_custom_call.1} parent=11 // pred_region
          _
        $region20: #{tpu_custom_call.1} parent=11 // pred_fallthru
          _
        // Predicated region
        $region21: #{tpu_custom_call.1} parent=11 // pred_check
          %p263 = pneg %p208
        $region22: #{tpu_custom_call.1} parent=11 // pred_check_branch
          %265 = sbr.rel (%p263) target = $region24
        $region23: #{tpu_custom_call.1} parent=11 // pred_region
          _
        $region24: #{tpu_custom_call.1} parent=11 // pred_fallthru
          _
      $region12: #{tpu_custom_call.1} parent=5 // pred_fallthru
        _
      %p266 = scmp.lt.s32.totalorder %s16, 2
      // Predicated region
      $region25: #{tpu_custom_call.1} parent=5 // pred_check
        %p267 = pneg %p266
      $region26: #{tpu_custom_call.1} parent=5 // pred_check_branch
        %269 = sbr.rel (%p267) target = $region28
      $region27: #{tpu_custom_call.1} parent=5 // pred_region
        // Predicated region
        $region29: #{tpu_custom_call.1} parent=27 // pred_check
          %p270 = pneg %p76
        $region30: #{tpu_custom_call.1} parent=27 // pred_check_branch
          %272 = sbr.rel (%p270) target = $region32
        $region31: #{tpu_custom_call.1} parent=27 // pred_region
          %s273 = smul.u32 32, %s23
          %p274 = scmp.lt.s32.totalorder %s24, 1
          %s275 = scalar_select %p274, %s24, 1
          %p276 = scmp.lt.s32.totalorder %s273, 31
          %s277 = scalar_select %p276, %s273, 31
          %s278 = smul.addr %s275, 32
          %s279 = sadd.s32 %s277, %s278
          %s280 = smul.addr %s279, 4
          %s281 = scalar_lea.vmem %s1, %s280
          %s282 = smul.u32 32, %s23
        $region32: #{tpu_custom_call.1} parent=27 // pred_fallthru
          _
        // Predicated region
        $region33: #{tpu_custom_call.1} parent=27 // pred_check
          %p283 = pneg %p104
        $region34: #{tpu_custom_call.1} parent=27 // pred_check_branch
          %285 = sbr.rel (%p283) target = $region36
        $region35: #{tpu_custom_call.1} parent=27 // pred_region
          %s286 = smul.u32 32, %s23
          %p287 = scmp.lt.s32.totalorder %s24, 1
          %s288 = scalar_select %p287, %s24, 1
          %p289 = scmp.lt.s32.totalorder %s286, 31
          %s290 = scalar_select %p289, %s286, 31
          %s291 = smul.addr %s288, 32
          %s292 = sadd.s32 %s290, %s291
          %s293 = smul.addr %s292, 4
          %s294 = scalar_lea.vmem %s2, %s293
          %s295 = smul.u32 32, %s23
        $region36: #{tpu_custom_call.1} parent=27 // pred_fallthru
          _
        // Predicated region
        $region37: #{tpu_custom_call.1} parent=27 // pred_check
          %p296 = pneg %p132
        $region38: #{tpu_custom_call.1} parent=27 // pred_check_branch
          %298 = sbr.rel (%p296) target = $region40
        $region39: #{tpu_custom_call.1} parent=27 // pred_region
          %s299 = smul.u32 32, %s23
          %p300 = scmp.lt.s32.totalorder %s24, 1
          %s301 = scalar_select %p300, %s24, 1
          %p302 = scmp.lt.s32.totalorder %s299, 31
          %s303 = scalar_select %p302, %s299, 31
          %s304 = smul.addr %s301, 32
          %s305 = sadd.s32 %s303, %s304
          %s306 = smul.addr %s305, 4
          %s307 = scalar_lea.vmem %s3, %s306
          %s308 = smul.u32 32, %s23
        $region40: #{tpu_custom_call.1} parent=27 // pred_fallthru
          _
        // Predicated region
        $region41: #{tpu_custom_call.1} parent=27 // pred_check
          %p309 = pneg %p160
        $region42: #{tpu_custom_call.1} parent=27 // pred_check_branch
          %311 = sbr.rel (%p309) target = $region44
        $region43: #{tpu_custom_call.1} parent=27 // pred_region
          %s312 = smul.u32 32, %s23
          %p313 = scmp.lt.s32.totalorder %s24, 1
          %s314 = scalar_select %p313, %s24, 1
          %p315 = scmp.lt.s32.totalorder %s312, 31
          %s316 = scalar_select %p315, %s312, 31
          %s317 = smul.addr %s314, 32
          %s318 = sadd.s32 %s316, %s317
          %s319 = smul.addr %s318, 4
          %s320 = scalar_lea.vmem %s4, %s319
          %s321 = smul.u32 32, %s23
        $region44: #{tpu_custom_call.1} parent=27 // pred_fallthru
          _
      $region28: #{tpu_custom_call.1} parent=5 // pred_fallthru
        _
      %p322 = scmp.le.s32.totalorder 1, %s16
      %p323 = scmp.lt.s32.totalorder %s16, 3
      %p324 = pnand %p322, %p323
      %p325 = pneg %p324
      // Predicated region
      $region45: #{tpu_custom_call.1} parent=5 // pred_check
        _
      $region46: #{tpu_custom_call.1} parent=5 // pred_check_branch
        %327 = sbr.rel (%p324) target = $region48
      $region47: #{tpu_custom_call.1} parent=5 // pred_region
        %s328 = ssub.s32 %s16, 1
        %s329 = smul.u32 32, %s25
        %p330 = scmp.lt.s32.totalorder %s329, 31
        %s331 = scalar_select %p330, %s329, 31
        %s332 = smul.addr %s331, 4
        %s333 = scalar_lea.vmem %s0, %s332
        %p334 = pneg %p54
        %p335 = pneg %p51
        %s336 = smul.u32 32, %s25
        %p337 = scmp.lt.s32.totalorder %s26, 1
        %s338 = scalar_select %p337, %s26, 1
        %p339 = scmp.lt.s32.totalorder %s336, 31
        %s340 = scalar_select %p339, %s336, 31
        %s341 = smul.addr %s338, 32
        %s342 = sadd.s32 %s340, %s341
        %s343 = smul.addr %s342, 4
        %s344 = scalar_lea.vmem %s1, %s343
        %p345 = pneg %p82
        %p346 = pneg %p79
        %s347 = smul.u32 32, %s25
        %p348 = scmp.lt.s32.totalorder %s26, 1
        %s349 = scalar_select %p348, %s26, 1
        %p350 = scmp.lt.s32.totalorder %s347, 31
        %s351 = scalar_select %p350, %s347, 31
        %s352 = smul.addr %s349, 32
        %s353 = sadd.s32 %s351, %s352
        %s354 = smul.addr %s353, 4
        %s355 = scalar_lea.vmem %s2, %s354
        %p356 = pneg %p110
        %p357 = pneg %p107
        %s358 = smul.u32 32, %s25
        %p359 = scmp.lt.s32.totalorder %s26, 1
        %s360 = scalar_select %p359, %s26, 1
        %p361 = scmp.lt.s32.totalorder %s358, 31
        %s362 = scalar_select %p361, %s358, 31
        %s363 = smul.addr %s360, 32
        %s364 = sadd.s32 %s362, %s363
        %s365 = smul.addr %s364, 4
        %s366 = scalar_lea.vmem %s3, %s365
        %p367 = pneg %p138
        %p368 = pneg %p135
        %s369 = smul.u32 32, %s25
        %p370 = scmp.lt.s32.totalorder %s26, 1
        %s371 = scalar_select %p370, %s26, 1
        %p372 = scmp.lt.s32.totalorder %s369, 31
        %s373 = scalar_select %p372, %s369, 31
        %s374 = smul.addr %s371, 32
        %s375 = sadd.s32 %s373, %s374
        %s376 = smul.addr %s375, 4
        %s377 = scalar_lea.vmem %s4, %s376
        %p378 = pneg %p166
        %p379 = pneg %p163
        %p380 = pneg %p187
        %p381 = pneg %p184
        %p382 = pneg %p208
        %p383 = pneg %p205
        %p384 = pneg %p236
        %p385 = pneg %p233
        %s386 = sand.u32 %s223, 1
        %s387 = scalar_lea.sflag [#allocation3], %s386
        %s388 = sand.u32 %s223, 1
        %s389 = smul.addr %s388, 256
        %s390 = scalar_lea.vmem [#allocation2], %s389
        %s391 = smul.u32 32, %s25
        %p392 = scmp.lt.s32.totalorder %s391, 31
        %s393 = scalar_select %p392, %s391, 31
        %s394 = smul.addr %s393, 4
        %s395 = scalar_lea.vmem %s0, %s394
        %s396 = smul.u32 32, %s25
        %s397 = smul.u32 32, %s25
        %p398 = scmp.lt.s32.totalorder %s26, 1
        %s399 = scalar_select %p398, %s26, 1
        %p400 = scmp.lt.s32.totalorder %s397, 31
        %s401 = scalar_select %p400, %s397, 31
        %s402 = smul.addr %s399, 32
        %s403 = sadd.s32 %s401, %s402
        %s404 = smul.addr %s403, 4
        %s405 = scalar_lea.vmem %s1, %s404
        %s406 = smul.u32 32, %s25
        %s407 = smul.u32 32, %s25
        %p408 = scmp.lt.s32.totalorder %s26, 1
        %s409 = scalar_select %p408, %s26, 1
        %p410 = scmp.lt.s32.totalorder %s407, 31
        %s411 = scalar_select %p410, %s407, 31
        %s412 = smul.addr %s409, 32
        %s413 = sadd.s32 %s411, %s412
        %s414 = smul.addr %s413, 4
        %s415 = scalar_lea.vmem %s2, %s414
        %s416 = smul.u32 32, %s25
        %s417 = smul.u32 32, %s25
        %p418 = scmp.lt.s32.totalorder %s26, 1
        %s419 = scalar_select %p418, %s26, 1
        %p420 = scmp.lt.s32.totalorder %s417, 31
        %s421 = scalar_select %p420, %s417, 31
        %s422 = smul.addr %s419, 32
        %s423 = sadd.s32 %s421, %s422
        %s424 = smul.addr %s423, 4
        %s425 = scalar_lea.vmem %s3, %s424
        %s426 = smul.u32 32, %s25
        %s427 = smul.u32 32, %s25
        %p428 = scmp.lt.s32.totalorder %s26, 1
        %s429 = scalar_select %p428, %s26, 1
        %p430 = scmp.lt.s32.totalorder %s427, 31
        %s431 = scalar_select %p430, %s427, 31
        %s432 = smul.addr %s429, 32
        %s433 = sadd.s32 %s431, %s432
        %s434 = smul.addr %s433, 4
        %s435 = scalar_lea.vmem %s4, %s434
        %s436 = smul.u32 32, %s25
        %s437 = smul.u32 32, %s25
        %v439 = vld [vmem:[%s395] sm:$0xf]
        %v440 = vld [vmem:[%s395 + $0x4] sm:$0xf]
        %v441 = vld [vmem:[%s395 + $0x8] sm:$0xf]
        %v442 = vld [vmem:[%s395 + $0xc] sm:$0xf]
        %v443 = vld [vmem:[%s395 + $0x10] sm:$0xf]
        %v444 = vld [vmem:[%s395 + $0x14] sm:$0xf]
        %v445 = vld [vmem:[%s395 + $0x18] sm:$0xf]
        %v446 = vld [vmem:[%s395 + $0x1c] sm:$0xf]
        %v447 = vld [vmem:[%s395 + $0x20] sm:$0xf]
        %v448 = vld [vmem:[%s395 + $0x24] sm:$0xf]
        %v449 = vld [vmem:[%s395 + $0x28] sm:$0xf]
        %v450 = vld [vmem:[%s395 + $0x2c] sm:$0xf]
        %v451 = vld [vmem:[%s395 + $0x30] sm:$0xf]
        %v452 = vld [vmem:[%s395 + $0x34] sm:$0xf]
        %v453 = vld [vmem:[%s395 + $0x38] sm:$0xf]
        %v454 = vld [vmem:[%s395 + $0x3c] sm:$0xf]
        %v455 = vld [vmem:[%s395 + $0x40] sm:$0xf]
        %v456 = vld [vmem:[%s395 + $0x44] sm:$0xf]
        %v457 = vld [vmem:[%s395 + $0x48] sm:$0xf]
        %v458 = vld [vmem:[%s395 + $0x4c] sm:$0xf]
        %v459 = vld [vmem:[%s395 + $0x50] sm:$0xf]
        %v460 = vld [vmem:[%s395 + $0x54] sm:$0xf]
        %v461 = vld [vmem:[%s395 + $0x58] sm:$0xf]
        %v462 = vld [vmem:[%s395 + $0x5c] sm:$0xf]
        %v463 = vld [vmem:[%s395 + $0x60] sm:$0xf]
        %v464 = vld [vmem:[%s395 + $0x64] sm:$0xf]
        %v465 = vld [vmem:[%s395 + $0x68] sm:$0xf]
        %v466 = vld [vmem:[%s395 + $0x6c] sm:$0xf]
        %v467 = vld [vmem:[%s395 + $0x70] sm:$0xf]
        %v468 = vld [vmem:[%s395 + $0x74] sm:$0xf]
        %v469 = vld [vmem:[%s395 + $0x78] sm:$0xf]
        %v470 = vld [vmem:[%s395 + $0x7c] sm:$0xf]
        %v471 = vunpack.c.l.bf16 %v439
        %v472 = vunpack.c.l.bf16 %v440
        %v473 = vunpack.c.l.bf16 %v441
        %v474 = vunpack.c.l.bf16 %v442
        %v475 = vunpack.c.l.bf16 %v443
        %v476 = vunpack.c.l.bf16 %v444
        %v477 = vunpack.c.l.bf16 %v445
        %v478 = vunpack.c.l.bf16 %v446
        %v479 = vunpack.c.l.bf16 %v447
        %v480 = vunpack.c.l.bf16 %v448
        %v481 = vunpack.c.l.bf16 %v449
        %v482 = vunpack.c.l.bf16 %v450
        %v483 = vunpack.c.l.bf16 %v451
        %v484 = vunpack.c.l.bf16 %v452
        %v485 = vunpack.c.l.bf16 %v453
        %v486 = vunpack.c.l.bf16 %v454
        %v487 = vunpack.c.l.bf16 %v455
        %v488 = vunpack.c.l.bf16 %v456
        %v489 = vunpack.c.l.bf16 %v457
        %v490 = vunpack.c.l.bf16 %v458
        %v491 = vunpack.c.l.bf16 %v459
        %v492 = vunpack.c.l.bf16 %v460
        %v493 = vunpack.c.l.bf16 %v461
        %v494 = vunpack.c.l.bf16 %v462
        %v495 = vunpack.c.l.bf16 %v463
        %v496 = vunpack.c.l.bf16 %v464
        %v497 = vunpack.c.l.bf16 %v465
        %v498 = vunpack.c.l.bf16 %v466
        %v499 = vunpack.c.l.bf16 %v467
        %v500 = vunpack.c.l.bf16 %v468
        %v501 = vunpack.c.l.bf16 %v469
        %v502 = vunpack.c.l.bf16 %v470
        %v503 = vld [vmem:[%s405] sm:$0xf]
        %v504 = vld [vmem:[%s405 + $0x4] sm:$0xf]
        %v505 = vld [vmem:[%s405 + $0x8] sm:$0xf]
        %v506 = vld [vmem:[%s405 + $0xc] sm:$0xf]
        %v507 = vld [vmem:[%s405 + $0x10] sm:$0xf]
        %v508 = vld [vmem:[%s405 + $0x14] sm:$0xf]
        %v509 = vld [vmem:[%s405 + $0x18] sm:$0xf]
        %v510 = vld [vmem:[%s405 + $0x1c] sm:$0xf]
        %v511 = vld [vmem:[%s405 + $0x20] sm:$0xf]
        %v512 = vld [vmem:[%s405 + $0x24] sm:$0xf]
        %v513 = vld [vmem:[%s405 + $0x28] sm:$0xf]
        %v514 = vld [vmem:[%s405 + $0x2c] sm:$0xf]
        %v515 = vld [vmem:[%s405 + $0x30] sm:$0xf]
        %v516 = vld [vmem:[%s405 + $0x34] sm:$0xf]
        %v517 = vld [vmem:[%s405 + $0x38] sm:$0xf]
        %v518 = vld [vmem:[%s405 + $0x3c] sm:$0xf]
        %v519 = vld [vmem:[%s405 + $0x40] sm:$0xf]
        %v520 = vld [vmem:[%s405 + $0x44] sm:$0xf]
        %v521 = vld [vmem:[%s405 + $0x48] sm:$0xf]
        %v522 = vld [vmem:[%s405 + $0x4c] sm:$0xf]
        %v523 = vld [vmem:[%s405 + $0x50] sm:$0xf]
        %v524 = vld [vmem:[%s405 + $0x54] sm:$0xf]
        %v525 = vld [vmem:[%s405 + $0x58] sm:$0xf]
        %v526 = vld [vmem:[%s405 + $0x5c] sm:$0xf]
        %v527 = vld [vmem:[%s405 + $0x60] sm:$0xf]
        %v528 = vld [vmem:[%s405 + $0x64] sm:$0xf]
        %v529 = vld [vmem:[%s405 + $0x68] sm:$0xf]
        %v530 = vld [vmem:[%s405 + $0x6c] sm:$0xf]
        %v531 = vld [vmem:[%s405 + $0x70] sm:$0xf]
        %v532 = vld [vmem:[%s405 + $0x74] sm:$0xf]
        %v533 = vld [vmem:[%s405 + $0x78] sm:$0xf]
        %v534 = vld [vmem:[%s405 + $0x7c] sm:$0xf]
        %v535 = vunpack.c.l.bf16 %v503
        %v536 = vunpack.c.l.bf16 %v504
        %v537 = vunpack.c.l.bf16 %v505
        %v538 = vunpack.c.l.bf16 %v506
        %v539 = vunpack.c.l.bf16 %v507
        %v540 = vunpack.c.l.bf16 %v508
        %v541 = vunpack.c.l.bf16 %v509
        %v542 = vunpack.c.l.bf16 %v510
        %v543 = vunpack.c.l.bf16 %v511
        %v544 = vunpack.c.l.bf16 %v512
        %v545 = vunpack.c.l.bf16 %v513
        %v546 = vunpack.c.l.bf16 %v514
        %v547 = vunpack.c.l.bf16 %v515
        %v548 = vunpack.c.l.bf16 %v516
        %v549 = vunpack.c.l.bf16 %v517
        %v550 = vunpack.c.l.bf16 %v518
        %v551 = vunpack.c.l.bf16 %v519
        %v552 = vunpack.c.l.bf16 %v520
        %v553 = vunpack.c.l.bf16 %v521
        %v554 = vunpack.c.l.bf16 %v522
        %v555 = vunpack.c.l.bf16 %v523
        %v556 = vunpack.c.l.bf16 %v524
        %v557 = vunpack.c.l.bf16 %v525
        %v558 = vunpack.c.l.bf16 %v526
        %v559 = vunpack.c.l.bf16 %v527
        %v560 = vunpack.c.l.bf16 %v528
        %v561 = vunpack.c.l.bf16 %v529
        %v562 = vunpack.c.l.bf16 %v530
        %v563 = vunpack.c.l.bf16 %v531
        %v564 = vunpack.c.l.bf16 %v532
        %v565 = vunpack.c.l.bf16 %v533
        %v566 = vunpack.c.l.bf16 %v534
        %v567 = vmul.f32 %v471, %v535
        %v568 = vmul.f32 %v472, %v536
        %v569 = vmul.f32 %v473, %v537
        %v570 = vmul.f32 %v474, %v538
        %v571 = vmul.f32 %v475, %v539
        %v572 = vmul.f32 %v476, %v540
        %v573 = vmul.f32 %v477, %v541
        %v574 = vmul.f32 %v478, %v542
        %v575 = vmul.f32 %v479, %v543
        %v576 = vmul.f32 %v480, %v544
        %v577 = vmul.f32 %v481, %v545
        %v578 = vmul.f32 %v482, %v546
        %v579 = vmul.f32 %v483, %v547
        %v580 = vmul.f32 %v484, %v548
        %v581 = vmul.f32 %v485, %v549
        %v582 = vmul.f32 %v486, %v550
        %v583 = vmul.f32 %v487, %v551
        %v584 = vmul.f32 %v488, %v552
        %v585 = vmul.f32 %v489, %v553
        %v586 = vmul.f32 %v490, %v554
        %v587 = vmul.f32 %v491, %v555
        %v588 = vmul.f32 %v492, %v556
        %v589 = vmul.f32 %v493, %v557
        %v590 = vmul.f32 %v494, %v558
        %v591 = vmul.f32 %v495, %v559
        %v592 = vmul.f32 %v496, %v560
        %v593 = vmul.f32 %v497, %v561
        %v594 = vmul.f32 %v498, %v562
        %v595 = vmul.f32 %v499, %v563
        %v596 = vmul.f32 %v500, %v564
        %v597 = vmul.f32 %v501, %v565
        %v598 = vmul.f32 %v502, %v566
        %s599 = scalar_lea.vmem %s395, 128
        %v600 = vld [vmem:[%s599] sm:$0xf]
        %v601 = vld [vmem:[%s599 + $0x4] sm:$0xf]
        %v602 = vld [vmem:[%s599 + $0x8] sm:$0xf]
        %v603 = vld [vmem:[%s599 + $0xc] sm:$0xf]
        %v604 = vld [vmem:[%s599 + $0x10] sm:$0xf]
        %v605 = vld [vmem:[%s599 + $0x14] sm:$0xf]
        %v606 = vld [vmem:[%s599 + $0x18] sm:$0xf]
        %v607 = vld [vmem:[%s599 + $0x1c] sm:$0xf]
        %v608 = vld [vmem:[%s599 + $0x20] sm:$0xf]
        %v609 = vld [vmem:[%s599 + $0x24] sm:$0xf]
        %v610 = vld [vmem:[%s599 + $0x28] sm:$0xf]
        %v611 = vld [vmem:[%s599 + $0x2c] sm:$0xf]
        %v612 = vld [vmem:[%s599 + $0x30] sm:$0xf]
        %v613 = vld [vmem:[%s599 + $0x34] sm:$0xf]
        %v614 = vld [vmem:[%s599 + $0x38] sm:$0xf]
        %v615 = vld [vmem:[%s599 + $0x3c] sm:$0xf]
        %v616 = vld [vmem:[%s599 + $0x40] sm:$0xf]
        %v617 = vld [vmem:[%s599 + $0x44] sm:$0xf]
        %v618 = vld [vmem:[%s599 + $0x48] sm:$0xf]
        %v619 = vld [vmem:[%s599 + $0x4c] sm:$0xf]
        %v620 = vld [vmem:[%s599 + $0x50] sm:$0xf]
        %v621 = vld [vmem:[%s599 + $0x54] sm:$0xf]
        %v622 = vld [vmem:[%s599 + $0x58] sm:$0xf]
        %v623 = vld [vmem:[%s599 + $0x5c] sm:$0xf]
        %v624 = vld [vmem:[%s599 + $0x60] sm:$0xf]
        %v625 = vld [vmem:[%s599 + $0x64] sm:$0xf]
        %v626 = vld [vmem:[%s599 + $0x68] sm:$0xf]
        %v627 = vld [vmem:[%s599 + $0x6c] sm:$0xf]
        %v628 = vld [vmem:[%s599 + $0x70] sm:$0xf]
        %v629 = vld [vmem:[%s599 + $0x74] sm:$0xf]
        %v630 = vld [vmem:[%s599 + $0x78] sm:$0xf]
        %v631 = vld [vmem:[%s599 + $0x7c] sm:$0xf]
        %v632 = vunpack.c.l.bf16 %v600
        %v633 = vunpack.c.l.bf16 %v601
        %v634 = vunpack.c.l.bf16 %v602
        %v635 = vunpack.c.l.bf16 %v603
        %v636 = vunpack.c.l.bf16 %v604
        %v637 = vunpack.c.l.bf16 %v605
        %v638 = vunpack.c.l.bf16 %v606
        %v639 = vunpack.c.l.bf16 %v607
        %v640 = vunpack.c.l.bf16 %v608
        %v641 = vunpack.c.l.bf16 %v609
        %v642 = vunpack.c.l.bf16 %v610
        %v643 = vunpack.c.l.bf16 %v611
        %v644 = vunpack.c.l.bf16 %v612
        %v645 = vunpack.c.l.bf16 %v613
        %v646 = vunpack.c.l.bf16 %v614
        %v647 = vunpack.c.l.bf16 %v615
        %v648 = vunpack.c.l.bf16 %v616
        %v649 = vunpack.c.l.bf16 %v617
        %v650 = vunpack.c.l.bf16 %v618
        %v651 = vunpack.c.l.bf16 %v619
        %v652 = vunpack.c.l.bf16 %v620
        %v653 = vunpack.c.l.bf16 %v621
        %v654 = vunpack.c.l.bf16 %v622
        %v655 = vunpack.c.l.bf16 %v623
        %v656 = vunpack.c.l.bf16 %v624
        %v657 = vunpack.c.l.bf16 %v625
        %v658 = vunpack.c.l.bf16 %v626
        %v659 = vunpack.c.l.bf16 %v627
        %v660 = vunpack.c.l.bf16 %v628
        %v661 = vunpack.c.l.bf16 %v629
        %v662 = vunpack.c.l.bf16 %v630
        %v663 = vunpack.c.l.bf16 %v631
        %v664 = vld [vmem:[%s415] sm:$0xf]
        %v665 = vld [vmem:[%s415 + $0x4] sm:$0xf]
        %v666 = vld [vmem:[%s415 + $0x8] sm:$0xf]
        %v667 = vld [vmem:[%s415 + $0xc] sm:$0xf]
        %v668 = vld [vmem:[%s415 + $0x10] sm:$0xf]
        %v669 = vld [vmem:[%s415 + $0x14] sm:$0xf]
        %v670 = vld [vmem:[%s415 + $0x18] sm:$0xf]
        %v671 = vld [vmem:[%s415 + $0x1c] sm:$0xf]
        %v672 = vld [vmem:[%s415 + $0x20] sm:$0xf]
        %v673 = vld [vmem:[%s415 + $0x24] sm:$0xf]
        %v674 = vld [vmem:[%s415 + $0x28] sm:$0xf]
        %v675 = vld [vmem:[%s415 + $0x2c] sm:$0xf]
        %v676 = vld [vmem:[%s415 + $0x30] sm:$0xf]
        %v677 = vld [vmem:[%s415 + $0x34] sm:$0xf]
        %v678 = vld [vmem:[%s415 + $0x38] sm:$0xf]
        %v679 = vld [vmem:[%s415 + $0x3c] sm:$0xf]
        %v680 = vld [vmem:[%s415 + $0x40] sm:$0xf]
        %v681 = vld [vmem:[%s415 + $0x44] sm:$0xf]
        %v682 = vld [vmem:[%s415 + $0x48] sm:$0xf]
        %v683 = vld [vmem:[%s415 + $0x4c] sm:$0xf]
        %v684 = vld [vmem:[%s415 + $0x50] sm:$0xf]
        %v685 = vld [vmem:[%s415 + $0x54] sm:$0xf]
        %v686 = vld [vmem:[%s415 + $0x58] sm:$0xf]
        %v687 = vld [vmem:[%s415 + $0x5c] sm:$0xf]
        %v688 = vld [vmem:[%s415 + $0x60] sm:$0xf]
        %v689 = vld [vmem:[%s415 + $0x64] sm:$0xf]
        %v690 = vld [vmem:[%s415 + $0x68] sm:$0xf]
        %v691 = vld [vmem:[%s415 + $0x6c] sm:$0xf]
        %v692 = vld [vmem:[%s415 + $0x70] sm:$0xf]
        %v693 = vld [vmem:[%s415 + $0x74] sm:$0xf]
        %v694 = vld [vmem:[%s415 + $0x78] sm:$0xf]
        %v695 = vld [vmem:[%s415 + $0x7c] sm:$0xf]
        %v696 = vunpack.c.l.bf16 %v664
        %v697 = vunpack.c.l.bf16 %v665
        %v698 = vunpack.c.l.bf16 %v666
        %v699 = vunpack.c.l.bf16 %v667
        %v700 = vunpack.c.l.bf16 %v668
        %v701 = vunpack.c.l.bf16 %v669
        %v702 = vunpack.c.l.bf16 %v670
        %v703 = vunpack.c.l.bf16 %v671
        %v704 = vunpack.c.l.bf16 %v672
        %v705 = vunpack.c.l.bf16 %v673
        %v706 = vunpack.c.l.bf16 %v674
        %v707 = vunpack.c.l.bf16 %v675
        %v708 = vunpack.c.l.bf16 %v676
        %v709 = vunpack.c.l.bf16 %v677
        %v710 = vunpack.c.l.bf16 %v678
        %v711 = vunpack.c.l.bf16 %v679
        %v712 = vunpack.c.l.bf16 %v680
        %v713 = vunpack.c.l.bf16 %v681
        %v714 = vunpack.c.l.bf16 %v682
        %v715 = vunpack.c.l.bf16 %v683
        %v716 = vunpack.c.l.bf16 %v684
        %v717 = vunpack.c.l.bf16 %v685
        %v718 = vunpack.c.l.bf16 %v686
        %v719 = vunpack.c.l.bf16 %v687
        %v720 = vunpack.c.l.bf16 %v688
        %v721 = vunpack.c.l.bf16 %v689
        %v722 = vunpack.c.l.bf16 %v690
        %v723 = vunpack.c.l.bf16 %v691
        %v724 = vunpack.c.l.bf16 %v692
        %v725 = vunpack.c.l.bf16 %v693
        %v726 = vunpack.c.l.bf16 %v694
        %v727 = vunpack.c.l.bf16 %v695
        %v728 = vmul.f32 %v632, %v696
        %v729 = vmul.f32 %v633, %v697
        %v730 = vmul.f32 %v634, %v698
        %v731 = vmul.f32 %v635, %v699
        %v732 = vmul.f32 %v636, %v700
        %v733 = vmul.f32 %v637, %v701
        %v734 = vmul.f32 %v638, %v702
        %v735 = vmul.f32 %v639, %v703
        %v736 = vmul.f32 %v640, %v704
        %v737 = vmul.f32 %v641, %v705
        %v738 = vmul.f32 %v642, %v706
        %v739 = vmul.f32 %v643, %v707
        %v740 = vmul.f32 %v644, %v708
        %v741 = vmul.f32 %v645, %v709
        %v742 = vmul.f32 %v646, %v710
        %v743 = vmul.f32 %v647, %v711
        %v744 = vmul.f32 %v648, %v712
        %v745 = vmul.f32 %v649, %v713
        %v746 = vmul.f32 %v650, %v714
        %v747 = vmul.f32 %v651, %v715
        %v748 = vmul.f32 %v652, %v716
        %v749 = vmul.f32 %v653, %v717
        %v750 = vmul.f32 %v654, %v718
        %v751 = vmul.f32 %v655, %v719
        %v752 = vmul.f32 %v656, %v720
        %v753 = vmul.f32 %v657, %v721
        %v754 = vmul.f32 %v658, %v722
        %v755 = vmul.f32 %v659, %v723
        %v756 = vmul.f32 %v660, %v724
        %v757 = vmul.f32 %v661, %v725
        %v758 = vmul.f32 %v662, %v726
        %v759 = vmul.f32 %v663, %v727
        %v760 = vadd.f32 %v567, %v728
        %v761 = vadd.f32 %v568, %v729
        %v762 = vadd.f32 %v569, %v730
        %v763 = vadd.f32 %v570, %v731
        %v764 = vadd.f32 %v571, %v732
        %v765 = vadd.f32 %v572, %v733
        %v766 = vadd.f32 %v573, %v734
        %v767 = vadd.f32 %v574, %v735
        %v768 = vadd.f32 %v575, %v736
        %v769 = vadd.f32 %v576, %v737
        %v770 = vadd.f32 %v577, %v738
        %v771 = vadd.f32 %v578, %v739
        %v772 = vadd.f32 %v579, %v740
        %v773 = vadd.f32 %v580, %v741
        %v774 = vadd.f32 %v581, %v742
        %v775 = vadd.f32 %v582, %v743
        %v776 = vadd.f32 %v583, %v744
        %v777 = vadd.f32 %v584, %v745
        %v778 = vadd.f32 %v585, %v746
        %v779 = vadd.f32 %v586, %v747
        %v780 = vadd.f32 %v587, %v748
        %v781 = vadd.f32 %v588, %v749
        %v782 = vadd.f32 %v589, %v750
        %v783 = vadd.f32 %v590, %v751
        %v784 = vadd.f32 %v591, %v752
        %v785 = vadd.f32 %v592, %v753
        %v786 = vadd.f32 %v593, %v754
        %v787 = vadd.f32 %v594, %v755
        %v788 = vadd.f32 %v595, %v756
        %v789 = vadd.f32 %v596, %v757
        %v790 = vadd.f32 %v597, %v758
        %v791 = vadd.f32 %v598, %v759
        %s792 = scalar_lea.vmem %s395, 256
        %v793 = vld [vmem:[%s792] sm:$0xf]
        %v794 = vld [vmem:[%s792 + $0x4] sm:$0xf]
        %v795 = vld [vmem:[%s792 + $0x8] sm:$0xf]
        %v796 = vld [vmem:[%s792 + $0xc] sm:$0xf]
        %v797 = vld [vmem:[%s792 + $0x10] sm:$0xf]
        %v798 = vld [vmem:[%s792 + $0x14] sm:$0xf]
        %v799 = vld [vmem:[%s792 + $0x18] sm:$0xf]
        %v800 = vld [vmem:[%s792 + $0x1c] sm:$0xf]
        %v801 = vld [vmem:[%s792 + $0x20] sm:$0xf]
        %v802 = vld [vmem:[%s792 + $0x24] sm:$0xf]
        %v803 = vld [vmem:[%s792 + $0x28] sm:$0xf]
        %v804 = vld [vmem:[%s792 + $0x2c] sm:$0xf]
        %v805 = vld [vmem:[%s792 + $0x30] sm:$0xf]
        %v806 = vld [vmem:[%s792 + $0x34] sm:$0xf]
        %v807 = vld [vmem:[%s792 + $0x38] sm:$0xf]
        %v808 = vld [vmem:[%s792 + $0x3c] sm:$0xf]
        %v809 = vld [vmem:[%s792 + $0x40] sm:$0xf]
        %v810 = vld [vmem:[%s792 + $0x44] sm:$0xf]
        %v811 = vld [vmem:[%s792 + $0x48] sm:$0xf]
        %v812 = vld [vmem:[%s792 + $0x4c] sm:$0xf]
        %v813 = vld [vmem:[%s792 + $0x50] sm:$0xf]
        %v814 = vld [vmem:[%s792 + $0x54] sm:$0xf]
        %v815 = vld [vmem:[%s792 + $0x58] sm:$0xf]
        %v816 = vld [vmem:[%s792 + $0x5c] sm:$0xf]
        %v817 = vld [vmem:[%s792 + $0x60] sm:$0xf]
        %v818 = vld [vmem:[%s792 + $0x64] sm:$0xf]
        %v819 = vld [vmem:[%s792 + $0x68] sm:$0xf]
        %v820 = vld [vmem:[%s792 + $0x6c] sm:$0xf]
        %v821 = vld [vmem:[%s792 + $0x70] sm:$0xf]
        %v822 = vld [vmem:[%s792 + $0x74] sm:$0xf]
        %v823 = vld [vmem:[%s792 + $0x78] sm:$0xf]
        %v824 = vld [vmem:[%s792 + $0x7c] sm:$0xf]
        %v825 = vunpack.c.l.bf16 %v793
        %v826 = vunpack.c.l.bf16 %v794
        %v827 = vunpack.c.l.bf16 %v795
        %v828 = vunpack.c.l.bf16 %v796
        %v829 = vunpack.c.l.bf16 %v797
        %v830 = vunpack.c.l.bf16 %v798
        %v831 = vunpack.c.l.bf16 %v799
        %v832 = vunpack.c.l.bf16 %v800
        %v833 = vunpack.c.l.bf16 %v801
        %v834 = vunpack.c.l.bf16 %v802
        %v835 = vunpack.c.l.bf16 %v803
        %v836 = vunpack.c.l.bf16 %v804
        %v837 = vunpack.c.l.bf16 %v805
        %v838 = vunpack.c.l.bf16 %v806
        %v839 = vunpack.c.l.bf16 %v807
        %v840 = vunpack.c.l.bf16 %v808
        %v841 = vunpack.c.l.bf16 %v809
        %v842 = vunpack.c.l.bf16 %v810
        %v843 = vunpack.c.l.bf16 %v811
        %v844 = vunpack.c.l.bf16 %v812
        %v845 = vunpack.c.l.bf16 %v813
        %v846 = vunpack.c.l.bf16 %v814
        %v847 = vunpack.c.l.bf16 %v815
        %v848 = vunpack.c.l.bf16 %v816
        %v849 = vunpack.c.l.bf16 %v817
        %v850 = vunpack.c.l.bf16 %v818
        %v851 = vunpack.c.l.bf16 %v819
        %v852 = vunpack.c.l.bf16 %v820
        %v853 = vunpack.c.l.bf16 %v821
        %v854 = vunpack.c.l.bf16 %v822
        %v855 = vunpack.c.l.bf16 %v823
        %v856 = vunpack.c.l.bf16 %v824
        %v857 = vld [vmem:[%s425] sm:$0xf]
        %v858 = vld [vmem:[%s425 + $0x4] sm:$0xf]
        %v859 = vld [vmem:[%s425 + $0x8] sm:$0xf]
        %v860 = vld [vmem:[%s425 + $0xc] sm:$0xf]
        %v861 = vld [vmem:[%s425 + $0x10] sm:$0xf]
        %v862 = vld [vmem:[%s425 + $0x14] sm:$0xf]
        %v863 = vld [vmem:[%s425 + $0x18] sm:$0xf]
        %v864 = vld [vmem:[%s425 + $0x1c] sm:$0xf]
        %v865 = vld [vmem:[%s425 + $0x20] sm:$0xf]
        %v866 = vld [vmem:[%s425 + $0x24] sm:$0xf]
        %v867 = vld [vmem:[%s425 + $0x28] sm:$0xf]
        %v868 = vld [vmem:[%s425 + $0x2c] sm:$0xf]
        %v869 = vld [vmem:[%s425 + $0x30] sm:$0xf]
        %v870 = vld [vmem:[%s425 + $0x34] sm:$0xf]
        %v871 = vld [vmem:[%s425 + $0x38] sm:$0xf]
        %v872 = vld [vmem:[%s425 + $0x3c] sm:$0xf]
        %v873 = vld [vmem:[%s425 + $0x40] sm:$0xf]
        %v874 = vld [vmem:[%s425 + $0x44] sm:$0xf]
        %v875 = vld [vmem:[%s425 + $0x48] sm:$0xf]
        %v876 = vld [vmem:[%s425 + $0x4c] sm:$0xf]
        %v877 = vld [vmem:[%s425 + $0x50] sm:$0xf]
        %v878 = vld [vmem:[%s425 + $0x54] sm:$0xf]
        %v879 = vld [vmem:[%s425 + $0x58] sm:$0xf]
        %v880 = vld [vmem:[%s425 + $0x5c] sm:$0xf]
        %v881 = vld [vmem:[%s425 + $0x60] sm:$0xf]
        %v882 = vld [vmem:[%s425 + $0x64] sm:$0xf]
        %v883 = vld [vmem:[%s425 + $0x68] sm:$0xf]
        %v884 = vld [vmem:[%s425 + $0x6c] sm:$0xf]
        %v885 = vld [vmem:[%s425 + $0x70] sm:$0xf]
        %v886 = vld [vmem:[%s425 + $0x74] sm:$0xf]
        %v887 = vld [vmem:[%s425 + $0x78] sm:$0xf]
        %v888 = vld [vmem:[%s425 + $0x7c] sm:$0xf]
        %v889 = vunpack.c.l.bf16 %v857
        %v890 = vunpack.c.l.bf16 %v858
        %v891 = vunpack.c.l.bf16 %v859
        %v892 = vunpack.c.l.bf16 %v860
        %v893 = vunpack.c.l.bf16 %v861
        %v894 = vunpack.c.l.bf16 %v862
        %v895 = vunpack.c.l.bf16 %v863
        %v896 = vunpack.c.l.bf16 %v864
        %v897 = vunpack.c.l.bf16 %v865
        %v898 = vunpack.c.l.bf16 %v866
        %v899 = vunpack.c.l.bf16 %v867
        %v900 = vunpack.c.l.bf16 %v868
        %v901 = vunpack.c.l.bf16 %v869
        %v902 = vunpack.c.l.bf16 %v870
        %v903 = vunpack.c.l.bf16 %v871
        %v904 = vunpack.c.l.bf16 %v872
        %v905 = vunpack.c.l.bf16 %v873
        %v906 = vunpack.c.l.bf16 %v874
        %v907 = vunpack.c.l.bf16 %v875
        %v908 = vunpack.c.l.bf16 %v876
        %v909 = vunpack.c.l.bf16 %v877
        %v910 = vunpack.c.l.bf16 %v878
        %v911 = vunpack.c.l.bf16 %v879
        %v912 = vunpack.c.l.bf16 %v880
        %v913 = vunpack.c.l.bf16 %v881
        %v914 = vunpack.c.l.bf16 %v882
        %v915 = vunpack.c.l.bf16 %v883
        %v916 = vunpack.c.l.bf16 %v884
        %v917 = vunpack.c.l.bf16 %v885
        %v918 = vunpack.c.l.bf16 %v886
        %v919 = vunpack.c.l.bf16 %v887
        %v920 = vunpack.c.l.bf16 %v888
        %v921 = vmul.f32 %v825, %v889
        %v922 = vmul.f32 %v826, %v890
        %v923 = vmul.f32 %v827, %v891
        %v924 = vmul.f32 %v828, %v892
        %v925 = vmul.f32 %v829, %v893
        %v926 = vmul.f32 %v830, %v894
        %v927 = vmul.f32 %v831, %v895
        %v928 = vmul.f32 %v832, %v896
        %v929 = vmul.f32 %v833, %v897
        %v930 = vmul.f32 %v834, %v898
        %v931 = vmul.f32 %v835, %v899
        %v932 = vmul.f32 %v836, %v900
        %v933 = vmul.f32 %v837, %v901
        %v934 = vmul.f32 %v838, %v902
        %v935 = vmul.f32 %v839, %v903
        %v936 = vmul.f32 %v840, %v904
        %v937 = vmul.f32 %v841, %v905
        %v938 = vmul.f32 %v842, %v906
        %v939 = vmul.f32 %v843, %v907
        %v940 = vmul.f32 %v844, %v908
        %v941 = vmul.f32 %v845, %v909
        %v942 = vmul.f32 %v846, %v910
        %v943 = vmul.f32 %v847, %v911
        %v944 = vmul.f32 %v848, %v912
        %v945 = vmul.f32 %v849, %v913
        %v946 = vmul.f32 %v850, %v914
        %v947 = vmul.f32 %v851, %v915
        %v948 = vmul.f32 %v852, %v916
        %v949 = vmul.f32 %v853, %v917
        %v950 = vmul.f32 %v854, %v918
        %v951 = vmul.f32 %v855, %v919
        %v952 = vmul.f32 %v856, %v920
        %v953 = vadd.f32 %v760, %v921
        %v954 = vadd.f32 %v761, %v922
        %v955 = vadd.f32 %v762, %v923
        %v956 = vadd.f32 %v763, %v924
        %v957 = vadd.f32 %v764, %v925
        %v958 = vadd.f32 %v765, %v926
        %v959 = vadd.f32 %v766, %v927
        %v960 = vadd.f32 %v767, %v928
        %v961 = vadd.f32 %v768, %v929
        %v962 = vadd.f32 %v769, %v930
        %v963 = vadd.f32 %v770, %v931
        %v964 = vadd.f32 %v771, %v932
        %v965 = vadd.f32 %v772, %v933
        %v966 = vadd.f32 %v773, %v934
        %v967 = vadd.f32 %v774, %v935
        %v968 = vadd.f32 %v775, %v936
        %v969 = vadd.f32 %v776, %v937
        %v970 = vadd.f32 %v777, %v938
        %v971 = vadd.f32 %v778, %v939
        %v972 = vadd.f32 %v779, %v940
        %v973 = vadd.f32 %v780, %v941
        %v974 = vadd.f32 %v781, %v942
        %v975 = vadd.f32 %v782, %v943
        %v976 = vadd.f32 %v783, %v944
        %v977 = vadd.f32 %v784, %v945
        %v978 = vadd.f32 %v785, %v946
        %v979 = vadd.f32 %v786, %v947
        %v980 = vadd.f32 %v787, %v948
        %v981 = vadd.f32 %v788, %v949
        %v982 = vadd.f32 %v789, %v950
        %v983 = vadd.f32 %v790, %v951
        %v984 = vadd.f32 %v791, %v952
        %s985 = scalar_lea.vmem %s395, 384
        %v986 = vld [vmem:[%s985] sm:$0xf]
        %v987 = vld [vmem:[%s985 + $0x4] sm:$0xf]
        %v988 = vld [vmem:[%s985 + $0x8] sm:$0xf]
        %v989 = vld [vmem:[%s985 + $0xc] sm:$0xf]
        %v990 = vld [vmem:[%s985 + $0x10] sm:$0xf]
        %v991 = vld [vmem:[%s985 + $0x14] sm:$0xf]
        %v992 = vld [vmem:[%s985 + $0x18] sm:$0xf]
        %v993 = vld [vmem:[%s985 + $0x1c] sm:$0xf]
        %v994 = vld [vmem:[%s985 + $0x20] sm:$0xf]
        %v995 = vld [vmem:[%s985 + $0x24] sm:$0xf]
        %v996 = vld [vmem:[%s985 + $0x28] sm:$0xf]
        %v997 = vld [vmem:[%s985 + $0x2c] sm:$0xf]
        %v998 = vld [vmem:[%s985 + $0x30] sm:$0xf]
        %v999 = vld [vmem:[%s985 + $0x34] sm:$0xf]
        %v1000 = vld [vmem:[%s985 + $0x38] sm:$0xf]
        %v1001 = vld [vmem:[%s985 + $0x3c] sm:$0xf]
        %v1002 = vld [vmem:[%s985 + $0x40] sm:$0xf]
        %v1003 = vld [vmem:[%s985 + $0x44] sm:$0xf]
        %v1004 = vld [vmem:[%s985 + $0x48] sm:$0xf]
        %v1005 = vld [vmem:[%s985 + $0x4c] sm:$0xf]
        %v1006 = vld [vmem:[%s985 + $0x50] sm:$0xf]
        %v1007 = vld [vmem:[%s985 + $0x54] sm:$0xf]
        %v1008 = vld [vmem:[%s985 + $0x58] sm:$0xf]
        %v1009 = vld [vmem:[%s985 + $0x5c] sm:$0xf]
        %v1010 = vld [vmem:[%s985 + $0x60] sm:$0xf]
        %v1011 = vld [vmem:[%s985 + $0x64] sm:$0xf]
        %v1012 = vld [vmem:[%s985 + $0x68] sm:$0xf]
        %v1013 = vld [vmem:[%s985 + $0x6c] sm:$0xf]
        %v1014 = vld [vmem:[%s985 + $0x70] sm:$0xf]
        %v1015 = vld [vmem:[%s985 + $0x74] sm:$0xf]
        %v1016 = vld [vmem:[%s985 + $0x78] sm:$0xf]
        %v1017 = vld [vmem:[%s985 + $0x7c] sm:$0xf]
        %v1018 = vunpack.c.l.bf16 %v986
        %v1019 = vunpack.c.l.bf16 %v987
        %v1020 = vunpack.c.l.bf16 %v988
        %v1021 = vunpack.c.l.bf16 %v989
        %v1022 = vunpack.c.l.bf16 %v990
        %v1023 = vunpack.c.l.bf16 %v991
        %v1024 = vunpack.c.l.bf16 %v992
        %v1025 = vunpack.c.l.bf16 %v993
        %v1026 = vunpack.c.l.bf16 %v994
        %v1027 = vunpack.c.l.bf16 %v995
        %v1028 = vunpack.c.l.bf16 %v996
        %v1029 = vunpack.c.l.bf16 %v997
        %v1030 = vunpack.c.l.bf16 %v998
        %v1031 = vunpack.c.l.bf16 %v999
        %v1032 = vunpack.c.l.bf16 %v1000
        %v1033 = vunpack.c.l.bf16 %v1001
        %v1034 = vunpack.c.l.bf16 %v1002
        %v1035 = vunpack.c.l.bf16 %v1003
        %v1036 = vunpack.c.l.bf16 %v1004
        %v1037 = vunpack.c.l.bf16 %v1005
        %v1038 = vunpack.c.l.bf16 %v1006
        %v1039 = vunpack.c.l.bf16 %v1007
        %v1040 = vunpack.c.l.bf16 %v1008
        %v1041 = vunpack.c.l.bf16 %v1009
        %v1042 = vunpack.c.l.bf16 %v1010
        %v1043 = vunpack.c.l.bf16 %v1011
        %v1044 = vunpack.c.l.bf16 %v1012
        %v1045 = vunpack.c.l.bf16 %v1013
        %v1046 = vunpack.c.l.bf16 %v1014
        %v1047 = vunpack.c.l.bf16 %v1015
        %v1048 = vunpack.c.l.bf16 %v1016
        %v1049 = vunpack.c.l.bf16 %v1017
        %v1050 = vld [vmem:[%s435] sm:$0xf]
        %v1051 = vld [vmem:[%s435 + $0x4] sm:$0xf]
        %v1052 = vld [vmem:[%s435 + $0x8] sm:$0xf]
        %v1053 = vld [vmem:[%s435 + $0xc] sm:$0xf]
        %v1054 = vld [vmem:[%s435 + $0x10] sm:$0xf]
        %v1055 = vld [vmem:[%s435 + $0x14] sm:$0xf]
        %v1056 = vld [vmem:[%s435 + $0x18] sm:$0xf]
        %v1057 = vld [vmem:[%s435 + $0x1c] sm:$0xf]
        %v1058 = vld [vmem:[%s435 + $0x20] sm:$0xf]
        %v1059 = vld [vmem:[%s435 + $0x24] sm:$0xf]
        %v1060 = vld [vmem:[%s435 + $0x28] sm:$0xf]
        %v1061 = vld [vmem:[%s435 + $0x2c] sm:$0xf]
        %v1062 = vld [vmem:[%s435 + $0x30] sm:$0xf]
        %v1063 = vld [vmem:[%s435 + $0x34] sm:$0xf]
        %v1064 = vld [vmem:[%s435 + $0x38] sm:$0xf]
        %v1065 = vld [vmem:[%s435 + $0x3c] sm:$0xf]
        %v1066 = vld [vmem:[%s435 + $0x40] sm:$0xf]
        %v1067 = vld [vmem:[%s435 + $0x44] sm:$0xf]
        %v1068 = vld [vmem:[%s435 + $0x48] sm:$0xf]
        %v1069 = vld [vmem:[%s435 + $0x4c] sm:$0xf]
        %v1070 = vld [vmem:[%s435 + $0x50] sm:$0xf]
        %v1071 = vld [vmem:[%s435 + $0x54] sm:$0xf]
        %v1072 = vld [vmem:[%s435 + $0x58] sm:$0xf]
        %v1073 = vld [vmem:[%s435 + $0x5c] sm:$0xf]
        %v1074 = vld [vmem:[%s435 + $0x60] sm:$0xf]
        %v1075 = vld [vmem:[%s435 + $0x64] sm:$0xf]
        %v1076 = vld [vmem:[%s435 + $0x68] sm:$0xf]
        %v1077 = vld [vmem:[%s435 + $0x6c] sm:$0xf]
        %v1078 = vld [vmem:[%s435 + $0x70] sm:$0xf]
        %v1079 = vld [vmem:[%s435 + $0x74] sm:$0xf]
        %v1080 = vld [vmem:[%s435 + $0x78] sm:$0xf]
        %v1081 = vld [vmem:[%s435 + $0x7c] sm:$0xf]
        %v1082 = vunpack.c.l.bf16 %v1050
        %v1083 = vunpack.c.l.bf16 %v1051
        %v1084 = vunpack.c.l.bf16 %v1052
        %v1085 = vunpack.c.l.bf16 %v1053
        %v1086 = vunpack.c.l.bf16 %v1054
        %v1087 = vunpack.c.l.bf16 %v1055
        %v1088 = vunpack.c.l.bf16 %v1056
        %v1089 = vunpack.c.l.bf16 %v1057
        %v1090 = vunpack.c.l.bf16 %v1058
        %v1091 = vunpack.c.l.bf16 %v1059
        %v1092 = vunpack.c.l.bf16 %v1060
        %v1093 = vunpack.c.l.bf16 %v1061
        %v1094 = vunpack.c.l.bf16 %v1062
        %v1095 = vunpack.c.l.bf16 %v1063
        %v1096 = vunpack.c.l.bf16 %v1064
        %v1097 = vunpack.c.l.bf16 %v1065
        %v1098 = vunpack.c.l.bf16 %v1066
        %v1099 = vunpack.c.l.bf16 %v1067
        %v1100 = vunpack.c.l.bf16 %v1068
        %v1101 = vunpack.c.l.bf16 %v1069
        %v1102 = vunpack.c.l.bf16 %v1070
        %v1103 = vunpack.c.l.bf16 %v1071
        %v1104 = vunpack.c.l.bf16 %v1072
        %v1105 = vunpack.c.l.bf16 %v1073
        %v1106 = vunpack.c.l.bf16 %v1074
        %v1107 = vunpack.c.l.bf16 %v1075
        %v1108 = vunpack.c.l.bf16 %v1076
        %v1109 = vunpack.c.l.bf16 %v1077
        %v1110 = vunpack.c.l.bf16 %v1078
        %v1111 = vunpack.c.l.bf16 %v1079
        %v1112 = vunpack.c.l.bf16 %v1080
        %v1113 = vunpack.c.l.bf16 %v1081
        %v1114 = vmul.f32 %v1018, %v1082
        %v1115 = vmul.f32 %v1019, %v1083
        %v1116 = vmul.f32 %v1020, %v1084
        %v1117 = vmul.f32 %v1021, %v1085
        %v1118 = vmul.f32 %v1022, %v1086
        %v1119 = vmul.f32 %v1023, %v1087
        %v1120 = vmul.f32 %v1024, %v1088
        %v1121 = vmul.f32 %v1025, %v1089
        %v1122 = vmul.f32 %v1026, %v1090
        %v1123 = vmul.f32 %v1027, %v1091
        %v1124 = vmul.f32 %v1028, %v1092
        %v1125 = vmul.f32 %v1029, %v1093
        %v1126 = vmul.f32 %v1030, %v1094
        %v1127 = vmul.f32 %v1031, %v1095
        %v1128 = vmul.f32 %v1032, %v1096
        %v1129 = vmul.f32 %v1033, %v1097
        %v1130 = vmul.f32 %v1034, %v1098
        %v1131 = vmul.f32 %v1035, %v1099
        %v1132 = vmul.f32 %v1036, %v1100
        %v1133 = vmul.f32 %v1037, %v1101
        %v1134 = vmul.f32 %v1038, %v1102
        %v1135 = vmul.f32 %v1039, %v1103
        %v1136 = vmul.f32 %v1040, %v1104
        %v1137 = vmul.f32 %v1041, %v1105
        %v1138 = vmul.f32 %v1042, %v1106
        %v1139 = vmul.f32 %v1043, %v1107
        %v1140 = vmul.f32 %v1044, %v1108
        %v1141 = vmul.f32 %v1045, %v1109
        %v1142 = vmul.f32 %v1046, %v1110
        %v1143 = vmul.f32 %v1047, %v1111
        %v1144 = vmul.f32 %v1048, %v1112
        %v1145 = vmul.f32 %v1049, %v1113
        %v1146 = vadd.f32 %v953, %v1114
        %v1147 = vadd.f32 %v954, %v1115
        %v1148 = vadd.f32 %v955, %v1116
        %v1149 = vadd.f32 %v956, %v1117
        %v1150 = vadd.f32 %v957, %v1118
        %v1151 = vadd.f32 %v958, %v1119
        %v1152 = vadd.f32 %v959, %v1120
        %v1153 = vadd.f32 %v960, %v1121
        %v1154 = vadd.f32 %v961, %v1122
        %v1155 = vadd.f32 %v962, %v1123
        %v1156 = vadd.f32 %v963, %v1124
        %v1157 = vadd.f32 %v964, %v1125
        %v1158 = vadd.f32 %v965, %v1126
        %v1159 = vadd.f32 %v966, %v1127
        %v1160 = vadd.f32 %v967, %v1128
        %v1161 = vadd.f32 %v968, %v1129
        %v1162 = vadd.f32 %v969, %v1130
        %v1163 = vadd.f32 %v970, %v1131
        %v1164 = vadd.f32 %v971, %v1132
        %v1165 = vadd.f32 %v972, %v1133
        %v1166 = vadd.f32 %v973, %v1134
        %v1167 = vadd.f32 %v974, %v1135
        %v1168 = vadd.f32 %v975, %v1136
        %v1169 = vadd.f32 %v976, %v1137
        %v1170 = vadd.f32 %v977, %v1138
        %v1171 = vadd.f32 %v978, %v1139
        %v1172 = vadd.f32 %v979, %v1140
        %v1173 = vadd.f32 %v980, %v1141
        %v1174 = vadd.f32 %v981, %v1142
        %v1175 = vadd.f32 %v982, %v1143
        %v1176 = vadd.f32 %v983, %v1144
        %v1177 = vadd.f32 %v984, %v1145
        %v1178 = vpack.c.bf16 %v1147, %v1146
        %v1179 = vpack.c.bf16 %v1149, %v1148
        %v1180 = vpack.c.bf16 %v1151, %v1150
        %v1181 = vpack.c.bf16 %v1153, %v1152
        %v1182 = vpack.c.bf16 %v1155, %v1154
        %v1183 = vpack.c.bf16 %v1157, %v1156
        %v1184 = vpack.c.bf16 %v1159, %v1158
        %v1185 = vpack.c.bf16 %v1161, %v1160
        %v1186 = vpack.c.bf16 %v1163, %v1162
        %v1187 = vpack.c.bf16 %v1165, %v1164
        %v1188 = vpack.c.bf16 %v1167, %v1166
        %v1189 = vpack.c.bf16 %v1169, %v1168
        %v1190 = vpack.c.bf16 %v1171, %v1170
        %v1191 = vpack.c.bf16 %v1173, %v1172
        %v1192 = vpack.c.bf16 %v1175, %v1174
        %v1193 = vpack.c.bf16 %v1177, %v1176
        %v1194 = vld [vmem:[%s5] sm:$0xf]
        %v1195 = vld [vmem:[%s5 + $0x4] sm:$0xf]
        %v1196 = vld [vmem:[%s5 + $0x8] sm:$0xf]
        %v1197 = vld [vmem:[%s5 + $0xc] sm:$0xf]
        %v1198 = vld [vmem:[%s5 + $0x10] sm:$0x3]
        %v1199 = vld [vmem:[%s6] sm:$0x1]
        %v1201 = vlaneseq
        %v1202 = vshrl.u32 %v1201, 7
        %v1203 = vsub.s32 0, %v1202
        %v1204 = vrot.slane %v1199, %v1203
        %v1211 = vunpack.c.l.b16 %v1194
        %v1212 = vunpack.c.l.b16 %v1195
        %v1213 = vunpack.c.l.b16 %v1196
        %v1214 = vunpack.c.l.b16 %v1197
        %v1215 = vunpack.c.l.b16 %v1198
        %v1216 = vpack.c.b16 %v1212, %v1211
        %v1217 = vpack.c.b16 %v1214, %v1213
        %v1218 = vpack.c.b16 %v1215, %v1215
        %vm1221 = vcmask 293888
        %v1223 = vsel %vm1221, %v1178, 0
        %v1226 = vsel %vm1221, %v1179, 0
        %v1229 = vsel %vm1221, %v1180, 0
        %v1232 = vsel %vm1221, %v1181, 0
        %v1235 = vsel %vm1221, %v1182, 0
        %v1238 = vsel %vm1221, %v1183, 0
        %v1241 = vsel %vm1221, %v1184, 0
        %v1244 = vsel %vm1221, %v1185, 0
        %v1247 = vsel %vm1221, %v1186, 0
        %v1250 = vsel %vm1221, %v1187, 0
        %v1253 = vsel %vm1221, %v1188, 0
        %v1256 = vsel %vm1221, %v1189, 0
        %v1259 = vsel %vm1221, %v1190, 0
        %v1262 = vsel %vm1221, %v1191, 0
        %v1265 = vsel %vm1221, %v1192, 0
        %v1268 = vsel %vm1221, %v1193, 0
        %vm1270 = vcmask 1041408
        %v1272 = vsel %vm1270, %v1218, 0
        %1274 = vmatprep.subr.bf16.mxu0 0
        %1275 = vmatpush1.bf16.msra.mxu0 %v1216
        %1276 = vmatprep.subr.bf16.mxu0 0
        %1277 = vmatpush1.bf16.msra.mxu0 %v1217
        %1278 = vmatprep.subr.bf16.mxu0 0
        %1279 = vmatpush1.bf16.msra.mxu0 %v1272
        %1280 = vmatprep.subr.bf16.mxu0 0
        %1281 = vmatpush1.bf16.msra.mxu0 0
        %1282 = vmatprep.subr.bf16.mxu0 0
        %1283 = vmatpush1.bf16.msra.mxu0 0
        %1284 = vmatprep.subr.bf16.mxu0 0
        %1285 = vmatpush1.bf16.msra.mxu0 0
        %1286 = vmatprep.subr.bf16.mxu0 0
        %1287 = vmatpush1.bf16.msra.mxu0 0
        %1288 = vmatprep.subr.bf16.mxu0 0
        %1289 = vmatpush1.bf16.msra.mxu0 0
        %1290 = vmatprep.subr.bf16.mxu0 0
        %1291 = vmatpush1.bf16.msra.mxu0 0
        %1292 = vmatprep.subr.bf16.mxu0 0
        %1293 = vmatpush1.bf16.msra.mxu0 0
        %1294 = vmatprep.subr.bf16.mxu0 0
        %1295 = vmatpush1.bf16.msra.mxu0 0
        %1296 = vmatprep.subr.bf16.mxu0 0
        %1297 = vmatpush1.bf16.msra.mxu0 0
        %1298 = vmatprep.subr.bf16.mxu0 0
        %1299 = vmatpush1.bf16.msra.mxu0 0
        %1300 = vmatprep.subr.bf16.mxu0 0
        %1301 = vmatpush1.bf16.msra.mxu0 0
        %1302 = vmatprep.subr.bf16.mxu0 0
        %1303 = vmatpush1.bf16.msra.mxu0 0
        %1304 = vmatprep.subr.bf16.mxu0 0
        %1305 = vmatpush1.bf16.msra.mxu0 0
        %1306 = vmatprep.mubr.bf16.mxu0 0
        %1307 = vmatmul.mubr.bf16.gmra.mrb[0].mxu0 %v1223
        %v1308 = vpop.f32.mrb[0].mxu0
        %v1309 = vadd.f32 %v1204, %v1308
        %v1310 = vpop.f32.mrb[0].mxu0
        %v1311 = vpop.f32.mrb[0].mxu0
        %v1312 = vadd.f32 %v1204, %v1311
        %v1313 = vpop.f32.mrb[0].mxu0
        %1314 = vmatprep.mubr.bf16.mxu0 0
        %1315 = vmatmul.mubr.bf16.gmra.mrb[0].mxu0 %v1226
        %v1316 = vpop.f32.mrb[0].mxu0
        %v1317 = vadd.f32 %v1204, %v1316
        %v1318 = vpop.f32.mrb[0].mxu0
        %v1319 = vpop.f32.mrb[0].mxu0
        %v1320 = vadd.f32 %v1204, %v1319
        %v1321 = vpop.f32.mrb[0].mxu0
        %1322 = vmatprep.mubr.bf16.mxu0 0
        %1323 = vmatmul.mubr.bf16.gmra.mrb[0].mxu0 %v1229
        %v1324 = vpop.f32.mrb[0].mxu0
        %v1325 = vadd.f32 %v1204, %v1324
        %v1326 = vpop.f32.mrb[0].mxu0
        %v1327 = vpop.f32.mrb[0].mxu0
        %v1328 = vadd.f32 %v1204, %v1327
        %v1329 = vpop.f32.mrb[0].mxu0
        %1330 = vmatprep.mubr.bf16.mxu0 0
        %1331 = vmatmul.mubr.bf16.gmra.mrb[0].mxu0 %v1232
        %v1332 = vpop.f32.mrb[0].mxu0
        %v1333 = vadd.f32 %v1204, %v1332
        %v1334 = vpop.f32.mrb[0].mxu0
        %v1335 = vpop.f32.mrb[0].mxu0
        %v1336 = vadd.f32 %v1204, %v1335
        %v1337 = vpop.f32.mrb[0].mxu0
        %1338 = vmatprep.mubr.bf16.mxu0 0
        %1339 = vmatmul.mubr.bf16.gmra.mrb[0].mxu0 %v1235
        %v1340 = vpop.f32.mrb[0].mxu0
        %v1341 = vadd.f32 %v1204, %v1340
        %v1342 = vpop.f32.mrb[0].mxu0
        %v1343 = vpop.f32.mrb[0].mxu0
        %v1344 = vadd.f32 %v1204, %v1343
        %v1345 = vpop.f32.mrb[0].mxu0
        %1346 = vmatprep.mubr.bf16.mxu0 0
        %1347 = vmatmul.mubr.bf16.gmra.mrb[0].mxu0 %v1238
        %v1348 = vpop.f32.mrb[0].mxu0
        %v1349 = vadd.f32 %v1204, %v1348
        %v1350 = vpop.f32.mrb[0].mxu0
        %v1351 = vpop.f32.mrb[0].mxu0
        %v1352 = vadd.f32 %v1204, %v1351
        %v1353 = vpop.f32.mrb[0].mxu0
        %1354 = vmatprep.mubr.bf16.mxu0 0
        %1355 = vmatmul.mubr.bf16.gmra.mrb[0].mxu0 %v1241
        %v1356 = vpop.f32.mrb[0].mxu0
        %v1357 = vadd.f32 %v1204, %v1356
        %v1358 = vpop.f32.mrb[0].mxu0
        %v1359 = vpop.f32.mrb[0].mxu0
        %v1360 = vadd.f32 %v1204, %v1359
        %v1361 = vpop.f32.mrb[0].mxu0
        %1362 = vmatprep.mubr.bf16.mxu0 0
        %1363 = vmatmul.mubr.bf16.gmra.mrb[0].mxu0 %v1244
        %v1364 = vpop.f32.mrb[0].mxu0
        %v1365 = vadd.f32 %v1204, %v1364
        %v1366 = vpop.f32.mrb[0].mxu0
        %v1367 = vpop.f32.mrb[0].mxu0
        %v1368 = vadd.f32 %v1204, %v1367
        %v1369 = vpop.f32.mrb[0].mxu0
        %1370 = vmatprep.mubr.bf16.mxu0 0
        %1371 = vmatmul.mubr.bf16.gmra.mrb[0].mxu0 %v1247
        %v1372 = vpop.f32.mrb[0].mxu0
        %v1373 = vadd.f32 %v1204, %v1372
        %v1374 = vpop.f32.mrb[0].mxu0
        %v1375 = vpop.f32.mrb[0].mxu0
        %v1376 = vadd.f32 %v1204, %v1375
        %v1377 = vpop.f32.mrb[0].mxu0
        %1378 = vmatprep.mubr.bf16.mxu0 0
        %1379 = vmatmul.mubr.bf16.gmra.mrb[0].mxu0 %v1250
        %v1380 = vpop.f32.mrb[0].mxu0
        %v1381 = vadd.f32 %v1204, %v1380
        %v1382 = vpop.f32.mrb[0].mxu0
        %v1383 = vpop.f32.mrb[0].mxu0
        %v1384 = vadd.f32 %v1204, %v1383
        %v1385 = vpop.f32.mrb[0].mxu0
        %1386 = vmatprep.mubr.bf16.mxu0 0
        %1387 = vmatmul.mubr.bf16.gmra.mrb[0].mxu0 %v1253
        %v1388 = vpop.f32.mrb[0].mxu0
        %v1389 = vadd.f32 %v1204, %v1388
        %v1390 = vpop.f32.mrb[0].mxu0
        %v1391 = vpop.f32.mrb[0].mxu0
        %v1392 = vadd.f32 %v1204, %v1391
        %v1393 = vpop.f32.mrb[0].mxu0
        %1394 = vmatprep.mubr.bf16.mxu0 0
        %1395 = vmatmul.mubr.bf16.gmra.mrb[0].mxu0 %v1256
        %v1396 = vpop.f32.mrb[0].mxu0
        %v1397 = vadd.f32 %v1204, %v1396
        %v1398 = vpop.f32.mrb[0].mxu0
        %v1399 = vpop.f32.mrb[0].mxu0
        %v1400 = vadd.f32 %v1204, %v1399
        %v1401 = vpop.f32.mrb[0].mxu0
        %1402 = vmatprep.mubr.bf16.mxu0 0
        %1403 = vmatmul.mubr.bf16.gmra.mrb[0].mxu0 %v1259
        %v1404 = vpop.f32.mrb[0].mxu0
        %v1405 = vadd.f32 %v1204, %v1404
        %v1406 = vpop.f32.mrb[0].mxu0
        %v1407 = vpop.f32.mrb[0].mxu0
        %v1408 = vadd.f32 %v1204, %v1407
        %v1409 = vpop.f32.mrb[0].mxu0
        %1410 = vmatprep.mubr.bf16.mxu0 0
        %1411 = vmatmul.mubr.bf16.gmra.mrb[0].mxu0 %v1262
        %v1412 = vpop.f32.mrb[0].mxu0
        %v1413 = vadd.f32 %v1204, %v1412
        %v1414 = vpop.f32.mrb[0].mxu0
        %v1415 = vpop.f32.mrb[0].mxu0
        %v1416 = vadd.f32 %v1204, %v1415
        %v1417 = vpop.f32.mrb[0].mxu0
        %1418 = vmatprep.mubr.bf16.mxu0 0
        %1419 = vmatmul.mubr.bf16.gmra.mrb[0].mxu0 %v1265
        %v1420 = vpop.f32.mrb[0].mxu0
        %v1421 = vadd.f32 %v1204, %v1420
        %v1422 = vpop.f32.mrb[0].mxu0
        %v1423 = vpop.f32.mrb[0].mxu0
        %v1424 = vadd.f32 %v1204, %v1423
        %v1425 = vpop.f32.mrb[0].mxu0
        %1426 = vmatprep.mubr.bf16.mxu0 0
        %1427 = vmatmul.mubr.bf16.gmra.mrb[0].mxu0 %v1268
        %v1428 = vpop.f32.mrb[0].mxu0
        %v1429 = vadd.f32 %v1204, %v1428
        %v1430 = vpop.f32.mrb[0].mxu0
        %v1431 = vpop.f32.mrb[0].mxu0
        %v1432 = vadd.f32 %v1204, %v1431
        %v1433 = vpop.f32.mrb[0].mxu0
        %1434 = vdwg.mxu0
        %1435 = vst [vmem:[%s390] sm:$0xff] %v1309
        %1436 = vst [vmem:[%s390 + $0x8] sm:$0xff] %v1312
        %1437 = vst [vmem:[%s390 + $0x10] sm:$0xff] %v1317
        %1438 = vst [vmem:[%s390 + $0x18] sm:$0xff] %v1320
        %1439 = vst [vmem:[%s390 + $0x20] sm:$0xff] %v1325
        %1440 = vst [vmem:[%s390 + $0x28] sm:$0xff] %v1328
        %1441 = vst [vmem:[%s390 + $0x30] sm:$0xff] %v1333
        %1442 = vst [vmem:[%s390 + $0x38] sm:$0xff] %v1336
        %1443 = vst [vmem:[%s390 + $0x40] sm:$0xff] %v1341
        %1444 = vst [vmem:[%s390 + $0x48] sm:$0xff] %v1344
        %1445 = vst [vmem:[%s390 + $0x50] sm:$0xff] %v1349
        %1446 = vst [vmem:[%s390 + $0x58] sm:$0xff] %v1352
        %1447 = vst [vmem:[%s390 + $0x60] sm:$0xff] %v1357
        %1448 = vst [vmem:[%s390 + $0x68] sm:$0xff] %v1360
        %1449 = vst [vmem:[%s390 + $0x70] sm:$0xff] %v1365
        %1450 = vst [vmem:[%s390 + $0x78] sm:$0xff] %v1368
        %1451 = vst [vmem:[%s390 + $0x80] sm:$0xff] %v1373
        %1452 = vst [vmem:[%s390 + $0x88] sm:$0xff] %v1376
        %1453 = vst [vmem:[%s390 + $0x90] sm:$0xff] %v1381
        %1454 = vst [vmem:[%s390 + $0x98] sm:$0xff] %v1384
        %1455 = vst [vmem:[%s390 + $0xa0] sm:$0xff] %v1389
        %1456 = vst [vmem:[%s390 + $0xa8] sm:$0xff] %v1392
        %1457 = vst [vmem:[%s390 + $0xb0] sm:$0xff] %v1397
        %1458 = vst [vmem:[%s390 + $0xb8] sm:$0xff] %v1400
        %1459 = vst [vmem:[%s390 + $0xc0] sm:$0xff] %v1405
        %1460 = vst [vmem:[%s390 + $0xc8] sm:$0xff] %v1408
        %1461 = vst [vmem:[%s390 + $0xd0] sm:$0xff] %v1413
        %1462 = vst [vmem:[%s390 + $0xd8] sm:$0xff] %v1416
        %1463 = vst [vmem:[%s390 + $0xe0] sm:$0xff] %v1421
        %1464 = vst [vmem:[%s390 + $0xe8] sm:$0xff] %v1424
        %1465 = vst [vmem:[%s390 + $0xf0] sm:$0xff] %v1429
        %1466 = vst [vmem:[%s390 + $0xf8] sm:$0xff] %v1432
        %s1467 = sand.u32 %s223, 1
        %s1468 = scalar_lea.sflag [#allocation3], %s1467
        %s1469 = sand.u32 %s223, 1
        %s1470 = smul.addr %s1469, 256
        %s1471 = scalar_lea.vmem [#allocation2], %s1470
        // Predicated region
        $region49: #{tpu_custom_call.1} parent=47 // pred_check
          %p1472 = pneg %p233
        $region50: #{tpu_custom_call.1} parent=47 // pred_check_branch
          %1474 = sbr.rel (%p1472) target = $region52
        $region51: #{tpu_custom_call.1} parent=47 // pred_region
          %s1475 = smul.u32 32, %s25
          %s1477 = ssub.s32 4096, 4096
          %1478 = vsyncadd %s1468, %s1477
          %s1479 = smul.addr %s26, 32
          %s1480 = sadd.s32 %s1475, %s1479
          %s1481 = smul.addr %s1480, 128
          %s1482 = scalar_lea.hbm %s7, %s1481
          %s1483 = sshll.u32 %s1471, 4
          %s1484 = int_to_ptr.vmem [resolvable:$true] %s1483
          %1489 = dma.vmem_to_hbm [thread:$0]  %s1484, 4096, %s1482, %s1468, 128, 128, 8
        $region52: #{tpu_custom_call.1} parent=47 // pred_fallthru
          _
      $region48: #{tpu_custom_call.1} parent=5 // pred_fallthru
        _
      %p1490 = scmp.le.s32.totalorder 2, %s16
      // Predicated region
      $region53: #{tpu_custom_call.1} parent=5 // pred_check
        %p1491 = pneg %p1490
      $region54: #{tpu_custom_call.1} parent=5 // pred_check_branch
        %1493 = sbr.rel (%p1491) target = $region56
      $region55: #{tpu_custom_call.1} parent=5 // pred_region
        %s1494 = ssub.s32 %s16, 2
        // Predicated region
        $region57: #{tpu_custom_call.1} parent=55 // pred_check
          %p1495 = pneg %p239
        $region58: #{tpu_custom_call.1} parent=55 // pred_check_branch
          %1497 = sbr.rel (%p1495) target = $region60
        $region59: #{tpu_custom_call.1} parent=55 // pred_region
          %s1498 = sand.u32 %s224, 1
          %s1499 = scalar_lea.sflag [#allocation3], %s1498
          %s1500 = sand.u32 %s224, 1
          %s1501 = smul.addr %s1500, 256
          %s1502 = scalar_lea.vmem [#allocation2], %s1501
          %1503 = dma.done %s1499, 4096
        $region60: #{tpu_custom_call.1} parent=55 // pred_fallthru
          _
      $region56: #{tpu_custom_call.1} parent=5 // pred_fallthru
        _
    $region6: #{tpu_custom_call.1} parent=1 // loop_footer
      %s20 = sadd.s32 1, %s16
    $region7: #{tpu_custom_call.1} parent=1 // loop_footer_branch
      %15 = sbr.rel target = $region3
    $region8: #{tpu_custom_call.1} parent=1 // loop_exit
      _
    %1504 = vsyncpa [#allocation3], 1
    %s1505 = scalar_lea.sflag [#allocation3], 1
    %1506 = vsyncpa %s1505, 1

</llo_original>
